<compile_context>
chip_gen: v7x
topology: tpu7x:2x2x1
jax: 0.10.0
libtpu: 0.0.40
codegen_flags: <defaults>
</compile_context>

<pallas_src>
import functools

import numpy as np
import jax
import jax.numpy as jnp
from jax.experimental import pallas as pl
from jax.experimental.pallas import tpu as pltpu

BN_EPS = 1e-5
N_CLASS = 32
_VMEM_LIMIT = 32 * 1024 * 1024
_W_BLOCK_BYTES = 2_621_440   # ~2.5 MiB bf16 weight block (per buffer)
_A_BLOCK_BYTES = 6_291_456   # ~6 MiB bf16 activation block (per buffer)


# ----------------------------------------------------------------------------
# Pallas kernels
# ----------------------------------------------------------------------------
def _mm_kernel(a_ref, w_ref, b_ref, s_ref, t_ref, o_ref, acc_ref, *, apply_relu):
    """Tiled matmul (bf16 operands, f32 accum) + (x+bias)*scale+shift [+relu]."""
    @pl.when(pl.program_id(2) == 0)
    def _():
        acc_ref[...] = jnp.zeros_like(acc_ref)

    acc_ref[...] += jnp.dot(a_ref[...], w_ref[...],
                            preferred_element_type=jnp.float32)

    @pl.when(pl.program_id(2) == pl.num_programs(2) - 1)
    def _():
        r = (acc_ref[...] + b_ref[...]) * s_ref[...] + t_ref[...]
        if apply_relu:
            r = jnp.maximum(r, 0.0)
        o_ref[...] = r.astype(o_ref.dtype)


_MM_RELU = functools.partial(_mm_kernel, apply_relu=True)
_MM_LINEAR = functools.partial(_mm_kernel, apply_relu=False)


def _max4_kernel(a_ref, b_ref, c_ref, d_ref, o_ref):
    o_ref[...] = jnp.maximum(jnp.maximum(a_ref[...], b_ref[...]),
                             jnp.maximum(c_ref[...], d_ref[...]))


def _add_kernel(a_ref, b_ref, o_ref):
    o_ref[...] = a_ref[...] + b_ref[...]


# ----------------------------------------------------------------------------
# Fused matmul wrapper (cached pallas_call executables)
# ----------------------------------------------------------------------------
def _round_up(x, m):
    return (x + m - 1) // m * m


def _select_tiles(M, K, N):
    if N >= 256:
        tn = 256
    elif N % 128 == 0:
        tn = 128
    else:
        tn = N                                   # full-dim lane block (legal)
    tm = 512 if M >= 512 else max(16, _round_up(M, 16))
    cap = min(_W_BLOCK_BYTES // (2 * tn), _A_BLOCK_BYTES // (2 * tm))
    cap = max(cap, 128)
    if K <= cap:
        tk = K                                   # single full-K block
    else:
        tk = 0
        for cand in range(128, cap + 1, 128):    # largest 128-multiple divisor
            if K % cand == 0:
                tk = cand
    return tm, tn, tk                            # tk == 0 -> caller pads K


@functools.lru_cache(maxsize=None)
def _matmul_call(M, K, N, tm, tn, tk, relu, out_dtype):
    grid = (pl.cdiv(M, tm), pl.cdiv(N, tn), K // tk)
    kernel = _MM_RELU if relu else _MM_LINEAR
    vec_spec = pl.BlockSpec((1, tn), lambda i, j, k: (0, j))
    fn = pl.pallas_call(
        kernel,
        out_shape=jax.ShapeDtypeStruct((M, N), out_dtype),
        grid_spec=pltpu.PrefetchScalarGridSpec(
            num_scalar_prefetch=0,
            grid=grid,
            in_specs=[
                pl.BlockSpec((tm, tk), lambda i, j, k: (i, k)),
                pl.BlockSpec((tk, tn), lambda i, j, k: (k, j)),
                vec_spec, vec_spec, vec_spec,
            ],
            out_specs=pl.BlockSpec((tm, tn), lambda i, j, k: (i, j)),
            scratch_shapes=[pltpu.VMEM((tm, tn), jnp.float32)],
        ),
        compiler_params=pltpu.CompilerParams(
            dimension_semantics=("parallel", "parallel", "arbitrary"),
            vmem_limit_bytes=_VMEM_LIMIT),
    )
    return jax.jit(fn)


def fused_matmul(a, w, bias, scale, shift, *, relu, out_dtype=jnp.bfloat16):
    """a: (M, K) bf16, w: (K, N) bf16, bias/scale/shift: (1, N) f32."""
    M, K = a.shape
    N = w.shape[1]
    tm, tn, tk = _select_tiles(M, K, N)
    if tk == 0:                       # rare fallback: zero-pad K to 128-multiple
        Kp = _round_up(K, 128)
        a = jnp.pad(a, ((0, 0), (0, Kp - K)))
        w = jnp.pad(w, ((0, Kp - K), (0, 0)))
        K, tk = Kp, 128
    fn = _matmul_call(M, K, N, tm, tn, tk, bool(relu), out_dtype)
    return fn(a, w, bias, scale, shift)


# ----------------------------------------------------------------------------
# Max pool (2x2, stride 2, ceil_mode) and skip-add
# ----------------------------------------------------------------------------
@functools.lru_cache(maxsize=None)
def _pool_call(n, ho, wo, c, hblk, dtype):
    spec = pl.BlockSpec((1, hblk, wo, c), lambda i, h: (i, h, 0, 0))
    fn = pl.pallas_call(
        _max4_kernel,
        out_shape=jax.ShapeDtypeStruct((n, ho, wo, c), dtype),
        grid_spec=pltpu.PrefetchScalarGridSpec(
            num_scalar_prefetch=0,
            grid=(n, pl.cdiv(ho, hblk)),
            in_specs=[spec] * 4,
            out_specs=spec,
        ),
        compiler_params=pltpu.CompilerParams(
            dimension_semantics=("parallel", "parallel"),
            vmem_limit_bytes=_VMEM_LIMIT),
    )
    return jax.jit(fn)


def maxpool2x2_ceil(x):
    """x: (N, H, W, C); 2x2 / stride-2 max pool with ceil_mode=True."""
    n, h, w, c = x.shape
    ho, wo = -(-h // 2), -(-w // 2)
    h2, w2 = 2 * ho, 2 * wo
    if h2 != h or w2 != w:
        x = jnp.pad(x, ((0, 0), (0, h2 - h), (0, w2 - w), (0, 0)),
                    constant_values=-jnp.inf)
    x00 = x[:, 0::2, 0::2, :]
    x01 = x[:, 0::2, 1::2, :]
    x10 = x[:, 1::2, 0::2, :]
    x11 = x[:, 1::2, 1::2, :]
    hblk = min(ho, 64)
    return _pool_call(n, ho, wo, c, hblk, x.dtype)(x00, x01, x10, x11)


@functools.lru_cache(maxsize=None)
def _add_call(m, k, dtype):
    spec = pl.BlockSpec((m, k), lambda: (0, 0))
    fn = pl.pallas_call(
        _add_kernel,
        out_shape=jax.ShapeDtypeStruct((m, k), dtype),
        in_specs=[spec, spec],
        out_specs=spec,
    )
    return jax.jit(fn)


def pallas_add(a, b):
    n, h, w, c = a.shape
    m, k = n * h, w * c                    # lane-dense 2-D view
    out = _add_call(m, k, a.dtype)(a.reshape(m, k), b.reshape(m, k))
    return out.reshape(a.shape)


# ----------------------------------------------------------------------------
# Conv2d (im2col in bf16 + fused Pallas matmul) and bilinear upsampling
# ----------------------------------------------------------------------------
def conv2d(x, prep, *, padding, relu, out_dtype=jnp.bfloat16):
    """x: (N, H, W, Cin) bf16.  prep: prepared layer params (see init_params)."""
    k = prep["k"]
    if padding:
        x = jnp.pad(x, ((0, 0), (padding, padding), (padding, padding), (0, 0)))
    nb, h, w, cin = x.shape
    ho, wo = h - k + 1, w - k + 1
    if k == 1:
        a = x.reshape(nb * ho * wo, cin)
    else:
        cols = [x[:, i:i + ho, j:j + wo, :] for i in range(k) for j in range(k)]
        a = jnp.concatenate(cols, axis=-1).reshape(nb * ho * wo, k * k * cin)
    out = fused_matmul(a, prep["w"], prep["b"], prep["s"], prep["t"],
                       relu=relu, out_dtype=out_dtype)
    return out.reshape(nb, ho, wo, prep["cout"])


@functools.lru_cache(maxsize=None)
def _upsample_matrix(h, w, k, s):
    """Dense (Ho*Wo, H*W) per-channel bilinear ConvTranspose2d operator."""
    def axis_mat(n):
        out = (n - 1) * s + k
        factor = (k + 1) // 2
        center = factor - 1 if k % 2 == 1 else factor - 0.5
        f1 = 1.0 - np.abs(np.arange(k) - center) / factor
        t = np.arange(out)[:, None] - np.arange(n)[None, :] * s
        valid = (t >= 0) & (t < k)
        return np.where(valid, f1[np.clip(t, 0, k - 1)], 0.0), out

    uh, ho = axis_mat(h)
    uw, wo = axis_mat(w)
    u = np.einsum('ai,bj->abij', uh, uw).reshape(ho * wo, h * w)
    kdim = h * w
    kpad = max(8, _round_up(kdim, 8))
    up = np.zeros((ho * wo, kpad), np.float32)
    up[:, :kdim] = u
    return jnp.asarray(up, jnp.bfloat16), ho, wo, kpad


def bilinear_upsample(x, k, s):
    """Depthwise bilinear upsample == ConvTranspose2d with the fixed diagonal
    bilinear weights of the upscore* layers.  x: (N, H, W, C) -> f32 output."""
    nb, h, w, c = x.shape
    u, ho, wo, kpad = _upsample_matrix(h, w, k, s)
    xm = jnp.transpose(x, (1, 2, 0, 3)).reshape(h * w, nb * c)
    xm = jnp.pad(xm, ((0, kpad - h * w), (0, 0))).astype(jnp.bfloat16)
    nc = nb * c
    zeros = jnp.zeros((1, nc), jnp.float32)
    ones = jnp.ones((1, nc), jnp.float32)
    y = fused_matmul(u, xm, zeros, ones, zeros, relu=False,
                     out_dtype=jnp.float32)                 # (Ho*Wo, N*C)
    return y.reshape(ho, wo, nb, c).transpose(2, 0, 1, 3)


# ----------------------------------------------------------------------------
# Parameters (random torch-layout weights, prepared once: transpose/fold/bf16)
# ----------------------------------------------------------------------------
_CONV_CFG = [
    # name, cin, cout, k, has_bn
    ("conv1_1", 1, 64, 3, True),
    ("conv1_2", 64, 64, 3, True),
    ("conv2_1", 64, 128, 3, True),
    ("conv2_2", 128, 128, 3, True),
    ("conv3_1", 128, 256, 3, True),
    ("conv3_2", 256, 256, 3, True),
    ("conv3_3", 256, 256, 3, True),
    ("conv4_1", 256, 512, 3, True),
    ("conv4_2", 512, 512, 3, True),
    ("conv4_3", 512, 512, 3, True),
    ("conv5_1", 512, 512, 3, True),
    ("conv5_2", 512, 512, 3, True),
    ("conv5_3", 512, 512, 3, True),
    ("fc6", 512, 4096, 7, True),
    ("fc7", 4096, 4096, 1, True),
    ("score_fr", 4096, N_CLASS, 1, False),
    ("score_pool3", 256, N_CLASS, 1, False),
    ("score_pool4", 512, N_CLASS, 1, False),
]


def init_params(key):
    params = {}
    for name, cin, cout, k, has_bn in _CONV_CFG:
        key, kw, kb, kg, kbt = jax.random.split(key, 5)
        fan_in = cin * k * k
        w = (jax.random.normal(kw, (cout, cin, k, k), jnp.float32)
             * np.sqrt(2.0 / fan_in))
        b = (jax.random.uniform(kb, (cout,), jnp.float32, -1.0, 1.0)
             / np.sqrt(fan_in))
        if has_bn:
            gamma = 1.0 + 0.1 * jax.random.normal(kg, (cout,), jnp.float32)
            beta = 0.1 * jax.random.normal(kbt, (cout,), jnp.float32)
            # BN folded with fresh-init running stats (mean=0, var=1), eval mode.
            scale = gamma / jnp.sqrt(1.0 + BN_EPS)
            shift = beta
        else:
            scale = jnp.ones((cout,), jnp.float32)
            shift = jnp.zeros((cout,), jnp.float32)
        # (Cout, Cin, kh, kw) -> (kh*kw*Cin, Cout), matching the im2col order.
        wm = jnp.transpose(w, (2, 3, 1, 0)).reshape(k * k * cin, cout)
        params[name] = {
            "w": wm.astype(jnp.bfloat16),
            "b": b.reshape(1, cout),
            "s": scale.reshape(1, cout),
            "t": shift.reshape(1, cout),
            "k": k,
            "cout": cout,
        }
    # The upscore* ConvTranspose2d weights are the fixed diagonal bilinear
    # filters (requires_grad=False); they are realized directly inside
    # bilinear_upsample(), so nothing to store here.
    return params


def _cbr(x, p, name, padding):
    return conv2d(x, p[name], padding=padding, relu=True)


# ----------------------------------------------------------------------------
# FCN8sColor forward (bin_type='soft', batch_norm=True)
# ----------------------------------------------------------------------------
def fcn8s_color_forward(x_nchw, p):
    x = jnp.transpose(x_nchw, (0, 2, 3, 1)).astype(jnp.bfloat16)   # NCHW -> NHWC
    h_in, w_in = x.shape[1], x.shape[2]

    h = _cbr(x, p, "conv1_1", 100)
    h = _cbr(h, p, "conv1_2", 1)
    h = maxpool2x2_ceil(h)

    h = _cbr(h, p, "conv2_1", 1)
    h = _cbr(h, p, "conv2_2", 1)
    h = maxpool2x2_ceil(h)

    h = _cbr(h, p, "conv3_1", 1)
    h = _cbr(h, p, "conv3_2", 1)
    h = _cbr(h, p, "conv3_3", 1)
    h = maxpool2x2_ceil(h)
    pool3 = h

    h = _cbr(h, p, "conv4_1", 1)
    h = _cbr(h, p, "conv4_2", 1)
    h = _cbr(h, p, "conv4_3", 1)
    h = maxpool2x2_ceil(h)
    pool4 = h

    h = _cbr(h, p, "conv5_1", 1)
    h = _cbr(h, p, "conv5_2", 1)
    h = _cbr(h, p, "conv5_3", 1)
    h = maxpool2x2_ceil(h)

    h = _cbr(h, p, "fc6", 0)    # drop6: identity (eval mode)
    h = _cbr(h, p, "fc7", 0)    # drop7: identity (eval mode)

    # ----- soft-bin head -----
    h = conv2d(h, p["score_fr"], padding=0, relu=False, out_dtype=jnp.float32)
    upscore2 = bilinear_upsample(h, 4, 2)

    sp4 = conv2d(pool4, p["score_pool4"], padding=0, relu=False,
                 out_dtype=jnp.float32)
    sp4c = sp4[:, 5:5 + upscore2.shape[1], 5:5 + upscore2.shape[2], :]
    h = pallas_add(upscore2, sp4c)

    upscore_pool4 = bilinear_upsample(h, 4, 2)

    sp3 = conv2d(pool3, p["score_pool3"], padding=0, relu=False,
                 out_dtype=jnp.float32)
    sp3c = sp3[:, 9:9 + upscore_pool4.shape[1], 9:9 + upscore_pool4.shape[2], :]
    h = pallas_add(upscore_pool4, sp3c)

    h = bilinear_upsample(h, 16, 8)
    h = h[:, 31:31 + h_in, 31:31 + w_in, :]

    return jnp.transpose(h, (0, 3, 1, 2)).astype(jnp.float32)      # NHWC -> NCHW


# ----------------------------------------------------------------------------
if __name__ == "__main__":
    x = jax.random.normal(jax.random.PRNGKey(0), (2, 1, 16, 16), jnp.float32)
    params = init_params(jax.random.PRNGKey(42))

    out = fcn8s_color_forward(x, params)
    out = jax.block_until_ready(out)

    assert out.shape == (2, N_CLASS, 16, 16), out.shape
    assert bool(jnp.all(jnp.isfinite(out)))
    print("KERNEL_OK")
</pallas_src>

<mosaic_0001>
module attributes {stable_mosaic.version = 11 : i64} {
  func.func @_mm_kernel(%arg0: i32, %arg1: i32, %arg2: i32, %arg3: memref<512x9xbf16, #tpu.memory_space<vmem>>, %arg4: memref<9x64xbf16, #tpu.memory_space<vmem>>, %arg5: memref<1x64xf32, #tpu.memory_space<vmem>>, %arg6: memref<1x64xf32, #tpu.memory_space<vmem>>, %arg7: memref<1x64xf32, #tpu.memory_space<vmem>>, %arg8: memref<512x64xbf16, #tpu.memory_space<vmem>>, %arg9: memref<512x64xf32, #tpu.memory_space<vmem>>) attributes {dimension_semantics = [#tpu.dimension_semantics<parallel>, #tpu.dimension_semantics<parallel>, #tpu.dimension_semantics<arbitrary>], iteration_bounds = array<i64: 179, 1, 1>, scalar_prefetch = 0 : i64, scratch_operands = 1 : i64, tpu.core_type = #tpu.core_type<tc>, window_params = [{transform_indices = @transform_0, window_bounds = array<i64: 512, 9>}, {transform_indices = @transform_1, window_bounds = array<i64: 9, 64>}, {transform_indices = @transform_2, window_bounds = array<i64: 1, 64>}, {transform_indices = @transform_3, window_bounds = array<i64: 1, 64>}, {transform_indices = @transform_4, window_bounds = array<i64: 1, 64>}, {transform_indices = @transform_5, window_bounds = array<i64: 512, 64>}]} {
    %c0_i32 = arith.constant 0 : i32
    %0 = arith.cmpi eq, %arg2, %c0_i32 : i32
    %1 = arith.extui %0 : i1 to i32
    %c0_i32_0 = arith.constant 0 : i32
    %2 = arith.cmpi ne, %1, %c0_i32_0 : i32
    scf.if %2 {
      %cst_10 = arith.constant 0.000000e+00 : f32
      %12 = vector.broadcast %cst_10 : f32 to vector<512x64xf32>
      %c0_11 = arith.constant 0 : index
      %c0_12 = arith.constant 0 : index
      %13 = vector.load %arg9[%c0_11, %c0_12] : memref<512x64xf32, #tpu.memory_space<vmem>>, vector<512x64xf32>
      tpu.vector_store %arg9[%c0_11, %c0_12], %12 {strides = array<i32>} : memref<512x64xf32, #tpu.memory_space<vmem>>, vector<512x64xf32>,
    } else {
    }
    %c0 = arith.constant 0 : index
    %c0_1 = arith.constant 0 : index
    %3 = vector.load %arg9[%c0, %c0_1] : memref<512x64xf32, #tpu.memory_space<vmem>>, vector<512x64xf32>
    %c0_2 = arith.constant 0 : index
    %c0_3 = arith.constant 0 : index
    %4 = vector.load %arg3[%c0_2, %c0_3] : memref<512x9xbf16, #tpu.memory_space<vmem>>, vector<512x9xbf16>
    %c0_4 = arith.constant 0 : index
    %c0_5 = arith.constant 0 : index
    %5 = vector.load %arg4[%c0_4, %c0_5] : memref<9x64xbf16, #tpu.memory_space<vmem>>, vector<9x64xbf16>
    %cst = arith.constant dense<0.000000e+00> : vector<512x64xf32>
    %6 = tpu.matmul %4, %5, %cst {dimension_numbers = #tpu.dot_dimension_numbers<[1], [0], [0], [1], [0, 0, 1, 1], [], []>} : vector<512x9xbf16>, vector<9x64xbf16>, vector<512x64xf32> -> vector<512x64xf32>
    %7 = arith.addf %3, %6 : vector<512x64xf32>
    %c0_6 = arith.constant 0 : index
    %c0_7 = arith.constant 0 : index
    %8 = vector.load %arg9[%c0_6, %c0_7] : memref<512x64xf32, #tpu.memory_space<vmem>>, vector<512x64xf32>
    tpu.vector_store %arg9[%c0_6, %c0_7], %7 {strides = array<i32>} : memref<512x64xf32, #tpu.memory_space<vmem>>, vector<512x64xf32>,
    %c0_i32_8 = arith.constant 0 : i32
    %9 = arith.cmpi eq, %arg2, %c0_i32_8 : i32
    %10 = arith.extui %9 : i1 to i32
    %c0_i32_9 = arith.constant 0 : i32
    %11 = arith.cmpi ne, %10, %c0_i32_9 : i32
    scf.if %11 {
      %c0_10 = arith.constant 0 : index
      %c0_11 = arith.constant 0 : index
      %12 = vector.load %arg9[%c0_10, %c0_11] : memref<512x64xf32, #tpu.memory_space<vmem>>, vector<512x64xf32>
      %c0_12 = arith.constant 0 : index
      %c0_13 = arith.constant 0 : index
      %13 = vector.load %arg5[%c0_12, %c0_13] : memref<1x64xf32, #tpu.memory_space<vmem>>, vector<1x64xf32>
      %14 = vector.broadcast %13 : vector<1x64xf32> to vector<512x64xf32>
      %15 = arith.addf %12, %14 : vector<512x64xf32>
      %c0_14 = arith.constant 0 : index
      %c0_15 = arith.constant 0 : index
      %16 = vector.load %arg6[%c0_14, %c0_15] : memref<1x64xf32, #tpu.memory_space<vmem>>, vector<1x64xf32>
      %17 = vector.broadcast %16 : vector<1x64xf32> to vector<512x64xf32>
      %18 = arith.mulf %15, %17 : vector<512x64xf32>
      %c0_16 = arith.constant 0 : index
      %c0_17 = arith.constant 0 : index
      %19 = vector.load %arg7[%c0_16, %c0_17] : memref<1x64xf32, #tpu.memory_space<vmem>>, vector<1x64xf32>
      %20 = vector.broadcast %19 : vector<1x64xf32> to vector<512x64xf32>
      %21 = arith.addf %18, %20 : vector<512x64xf32>
      %cst_18 = arith.constant 0.000000e+00 : f32
      %22 = vector.broadcast %cst_18 : f32 to vector<512x64xf32>
      %23 = arith.maximumf %21, %22 : vector<512x64xf32>
      %24 = arith.truncf %23 : vector<512x64xf32> to vector<512x64xbf16>
      %c0_19 = arith.constant 0 : index
      %c0_20 = arith.constant 0 : index
      %25 = vector.load %arg8[%c0_19, %c0_20] : memref<512x64xbf16, #tpu.memory_space<vmem>>, vector<512x64xbf16>
      tpu.vector_store %arg8[%c0_19, %c0_20], %24 {strides = array<i32>} : memref<512x64xbf16, #tpu.memory_space<vmem>>, vector<512x64xbf16>,
    } else {
    }
    return
  }
  func.func @transform_0(%arg0: i32, %arg1: i32, %arg2: i32) -> (i32, i32) {
    %c0_i32 = arith.constant 0 : i32
    return %arg0, %arg2 : i32, i32
  }
  func.func @transform_1(%arg0: i32, %arg1: i32, %arg2: i32) -> (i32, i32) {
    %c0_i32 = arith.constant 0 : i32
    return %arg2, %arg1 : i32, i32
  }
  func.func @transform_2(%arg0: i32, %arg1: i32, %arg2: i32) -> (i32, i32) {
    %c0_i32 = arith.constant 0 : i32
    %c0_i32_0 = arith.constant 0 : i32
    return %c0_i32, %arg1 : i32, i32
  }
  func.func @transform_3(%arg0: i32, %arg1: i32, %arg2: i32) -> (i32, i32) {
    %c0_i32 = arith.constant 0 : i32
    %c0_i32_0 = arith.constant 0 : i32
    return %c0_i32, %arg1 : i32, i32
  }
  func.func @transform_4(%arg0: i32, %arg1: i32, %arg2: i32) -> (i32, i32) {
    %c0_i32 = arith.constant 0 : i32
    %c0_i32_0 = arith.constant 0 : i32
    return %c0_i32, %arg1 : i32, i32
  }
  func.func @transform_5(%arg0: i32, %arg1: i32, %arg2: i32) -> (i32, i32) {
    %c0_i32 = arith.constant 0 : i32
    return %arg0, %arg1 : i32, i32
  }
}

</mosaic_0001>

<llo_original>
// kernel: tpu_custom_call.1
$region0: #{tpu_custom_call.1}
  #allocation0 [shape = 'u32[]', space=smem, size = 0x4, offset = 0x4, fixed_abs, tag = 'smem constant byte address 0x4 - core index']
  #allocation1 [shape = 'u32[144,128]{1,0:T(1,128)}', space=vmem, size = 0x12000, scoped, tag = 'internal scratch']
  #allocation2 [shape = 'f32[512,64]{1,0:T(8,128)}', space=vmem, size = 0x40000, scoped, tag = 'scratch operand']
  %s0 = inlined_call_operand.hbm [shape: bf16[91592,9], index: 0, kind: input, shape index: {}]
  %s1 = inlined_call_operand.vmem [shape: bf16[9,64], index: 1, kind: input, shape index: {}]
  %s2 = inlined_call_operand.vmem [shape: f32[1,64], index: 2, kind: input, shape index: {}]
  %s3 = inlined_call_operand.vmem [shape: f32[1,64], index: 3, kind: input, shape index: {}]
  %s4 = inlined_call_operand.vmem [shape: f32[1,64], index: 4, kind: input, shape index: {}]
  %s5 = inlined_call_operand.vmem [shape: bf16[91592,64], index: 5, kind: output, shape index: {}]
  %s6 = sld [smem:[#allocation0]]
  $region109: #{tpu_custom_call.1} parent=0
    _
  %s8 = ssub.s32 1, %s6
  %s9 = scalar_select 0, %s8, %s6
  $region1: #{tpu_custom_call.1} parent=0
    #allocation3 [shape = 'u8[262144]{0}', space=vmem, size = 0x40000, scoped, tag = 'input window, operand 0']
    #allocation4 [shape = 's32[2]{0}', space=sflag, size = 0x8, scoped, tag = 'scoped memory for tpu_custom_call.1']
    #allocation5 [shape = 'u8[262144]{0}', space=vmem, size = 0x40000, scoped, tag = 'output window, operand 0']
    %10 = vsyncpa [#allocation4], 0
    %s11 = scalar_lea.sflag [#allocation4], 1
    %12 = vsyncpa %s11, 0
    loop: start=0, step=1, limit=181
    $region2: #{tpu_custom_call.1} parent=1 // loop_pre_header
      _
    $region3: #{tpu_custom_call.1} parent=1 // loop_header
      %s14 = sphi 0, %s18
      %p15 = scmp.ge.s32.totalorder %s14, 181
      %s21 = sphi 0, %s40
      %s22 = sphi 0, %s36
      %s23 = sphi 0, %s32
      %s24 = sphi 0, %s21
      %s25 = sphi 0, %s22
      %s26 = sphi 0, %s23
      %s27 = sphi 0, %s24
      %s28 = sphi 0, %s25
      %s29 = sphi 0, %s26
      %s45 = sphi 0, %s47
      %s48 = sphi 0, %s45
      %s49 = sphi 0, %s48
      %s65 = sphi 0, %s49
      %s73 = sphi 0, %s75
      %s76 = sphi 0, %s73
      %s77 = sphi 0, %s76
      %s93 = sphi 0, %s77
      %s99 = sphi 0, %s101
      %s102 = sphi 0, %s99
      %s103 = sphi 0, %s102
      %s119 = sphi 0, %s103
      %s125 = sphi 0, %s127
      %s128 = sphi 0, %s125
      %s129 = sphi 0, %s128
      %s145 = sphi 0, %s129
      %s151 = sphi 0, %s153
      %s154 = sphi 0, %s151
      %s155 = sphi 0, %s154
      %s171 = sphi 0, %s155
      %s179 = sphi 0, %s181
      %s182 = sphi 0, %s179
      %s183 = sphi 0, %s182
      %s199 = sphi 0, %s183
    $region4: #{tpu_custom_call.1} parent=1 // loop_header_branch
      %17 = sbr.rel (%p15) target = $region8
    $region5: #{tpu_custom_call.1} parent=1 // loop_body
      %s19 = ssub.s32 %s14, 1
      %s20 = ssub.s32 %s14, 2
      %s30 = sadd.s32 1, %s23
      %p31 = scmp.ge.s32.totalorder %s30, 1
      %s32 = scalar_select %p31, 0, %s30
      %s33 = sadd.s32 1, %s22
      %s34 = scalar_select %p31, %s33, %s22
      %p35 = scmp.ge.s32.totalorder %s34, 1
      %s36 = scalar_select %p35, 0, %s34
      %s37 = sadd.s32 1, %s21
      %s38 = scalar_select %p35, %s37, %s21
      %p39 = scmp.ge.s32.totalorder %s38, 179
      %s40 = scalar_select %p39, 0, %s38
      %s41 = ssub.s32 %s21, %s40
      %s42 = ssub.s32 %s23, %s32
      %s43 = sor.u32 %s41, %s42
      %p44 = scmp.eq.s32.totalorder %s43, 0
      %s46 = sadd.s32 %s45, 1
      %s47 = scalar_select %p44, %s45, %s46
      %p50 = pneg %p44
      %p51 = scmp.eq.s32.totalorder %s14, 178
      %p52 = por %p50, %p51
      %p53 = scmp.ne.s32.totalorder %s45, %s48
      %p54 = scmp.eq.s32.totalorder %s14, 0
      %p55 = por %p53, %p54
      %p56 = scmp.ne.s32.totalorder %s45, %s48
      %p57 = scmp.eq.s32.totalorder %s19, 178
      %p58 = por %p56, %p57
      %p59 = scmp.ne.s32.totalorder %s48, %s49
      %p60 = scmp.eq.s32.totalorder %s19, 0
      %p61 = por %p59, %p60
      %p62 = scmp.ne.s32.totalorder %s48, %s49
      %p63 = scmp.eq.s32.totalorder %s20, 178
      %p64 = por %p62, %p63
      %p66 = scmp.ne.s32.totalorder %s49, %s65
      %p67 = scmp.eq.s32.totalorder %s20, 0
      %p68 = por %p66, %p67
      %s69 = ssub.s32 %s23, %s32
      %s70 = ssub.s32 %s22, %s36
      %s71 = sor.u32 %s69, %s70
      %p72 = scmp.eq.s32.totalorder %s71, 0
      %s74 = sadd.s32 %s73, 1
      %s75 = scalar_select %p72, %s73, %s74
      %p78 = pneg %p72
      %p79 = scmp.eq.s32.totalorder %s14, 178
      %p80 = por %p78, %p79
      %p81 = scmp.ne.s32.totalorder %s73, %s76
      %p82 = scmp.eq.s32.totalorder %s14, 0
      %p83 = por %p81, %p82
      %p84 = scmp.ne.s32.totalorder %s73, %s76
      %p85 = scmp.eq.s32.totalorder %s19, 178
      %p86 = por %p84, %p85
      %p87 = scmp.ne.s32.totalorder %s76, %s77
      %p88 = scmp.eq.s32.totalorder %s19, 0
      %p89 = por %p87, %p88
      %p90 = scmp.ne.s32.totalorder %s76, %s77
      %p91 = scmp.eq.s32.totalorder %s20, 178
      %p92 = por %p90, %p91
      %p94 = scmp.ne.s32.totalorder %s77, %s93
      %p95 = scmp.eq.s32.totalorder %s20, 0
      %p96 = por %p94, %p95
      %s97 = ssub.s32 %s22, %s36
      %p98 = scmp.eq.s32.totalorder %s97, 0
      %s100 = sadd.s32 %s99, 1
      %s101 = scalar_select %p98, %s99, %s100
      %p104 = pneg %p98
      %p105 = scmp.eq.s32.totalorder %s14, 178
      %p106 = por %p104, %p105
      %p107 = scmp.ne.s32.totalorder %s99, %s102
      %p108 = scmp.eq.s32.totalorder %s14, 0
      %p109 = por %p107, %p108
      %p110 = scmp.ne.s32.totalorder %s99, %s102
      %p111 = scmp.eq.s32.totalorder %s19, 178
      %p112 = por %p110, %p111
      %p113 = scmp.ne.s32.totalorder %s102, %s103
      %p114 = scmp.eq.s32.totalorder %s19, 0
      %p115 = por %p113, %p114
      %p116 = scmp.ne.s32.totalorder %s102, %s103
      %p117 = scmp.eq.s32.totalorder %s20, 178
      %p118 = por %p116, %p117
      %p120 = scmp.ne.s32.totalorder %s103, %s119
      %p121 = scmp.eq.s32.totalorder %s20, 0
      %p122 = por %p120, %p121
      %s123 = ssub.s32 %s22, %s36
      %p124 = scmp.eq.s32.totalorder %s123, 0
      %s126 = sadd.s32 %s125, 1
      %s127 = scalar_select %p124, %s125, %s126
      %p130 = pneg %p124
      %p131 = scmp.eq.s32.totalorder %s14, 178
      %p132 = por %p130, %p131
      %p133 = scmp.ne.s32.totalorder %s125, %s128
      %p134 = scmp.eq.s32.totalorder %s14, 0
      %p135 = por %p133, %p134
      %p136 = scmp.ne.s32.totalorder %s125, %s128
      %p137 = scmp.eq.s32.totalorder %s19, 178
      %p138 = por %p136, %p137
      %p139 = scmp.ne.s32.totalorder %s128, %s129
      %p140 = scmp.eq.s32.totalorder %s19, 0
      %p141 = por %p139, %p140
      %p142 = scmp.ne.s32.totalorder %s128, %s129
      %p143 = scmp.eq.s32.totalorder %s20, 178
      %p144 = por %p142, %p143
      %p146 = scmp.ne.s32.totalorder %s129, %s145
      %p147 = scmp.eq.s32.totalorder %s20, 0
      %p148 = por %p146, %p147
      %s149 = ssub.s32 %s22, %s36
      %p150 = scmp.eq.s32.totalorder %s149, 0
      %s152 = sadd.s32 %s151, 1
      %s153 = scalar_select %p150, %s151, %s152
      %p156 = pneg %p150
      %p157 = scmp.eq.s32.totalorder %s14, 178
      %p158 = por %p156, %p157
      %p159 = scmp.ne.s32.totalorder %s151, %s154
      %p160 = scmp.eq.s32.totalorder %s14, 0
      %p161 = por %p159, %p160
      %p162 = scmp.ne.s32.totalorder %s151, %s154
      %p163 = scmp.eq.s32.totalorder %s19, 178
      %p164 = por %p162, %p163
      %p165 = scmp.ne.s32.totalorder %s154, %s155
      %p166 = scmp.eq.s32.totalorder %s19, 0
      %p167 = por %p165, %p166
      %p168 = scmp.ne.s32.totalorder %s154, %s155
      %p169 = scmp.eq.s32.totalorder %s20, 178
      %p170 = por %p168, %p169
      %p172 = scmp.ne.s32.totalorder %s155, %s171
      %p173 = scmp.eq.s32.totalorder %s20, 0
      %p174 = por %p172, %p173
      %s175 = ssub.s32 %s21, %s40
      %s176 = ssub.s32 %s22, %s36
      %s177 = sor.u32 %s175, %s176
      %p178 = scmp.eq.s32.totalorder %s177, 0
      %s180 = sadd.s32 %s179, 1
      %s181 = scalar_select %p178, %s179, %s180
      %p184 = pneg %p178
      %p185 = scmp.eq.s32.totalorder %s14, 178
      %p186 = por %p184, %p185
      %p187 = scmp.ne.s32.totalorder %s179, %s182
      %p188 = scmp.eq.s32.totalorder %s14, 0
      %p189 = por %p187, %p188
      %p190 = scmp.ne.s32.totalorder %s179, %s182
      %p191 = scmp.eq.s32.totalorder %s19, 178
      %p192 = por %p190, %p191
      %p193 = scmp.ne.s32.totalorder %s182, %s183
      %p194 = scmp.eq.s32.totalorder %s19, 0
      %p195 = por %p193, %p194
      %p196 = scmp.ne.s32.totalorder %s182, %s183
      %p197 = scmp.eq.s32.totalorder %s20, 178
      %p198 = por %p196, %p197
      %p200 = scmp.ne.s32.totalorder %s183, %s199
      %p201 = scmp.eq.s32.totalorder %s20, 0
      %p202 = por %p200, %p201
      %p203 = scmp.le.s32.totalorder 1, %s14
      %p204 = scmp.lt.s32.totalorder %s14, 180
      %p205 = pnand %p203, %p204
      %p206 = pneg %p205
      // Predicated region
      $region9: #{tpu_custom_call.1} parent=5 // pred_check
        _
      $region10: #{tpu_custom_call.1} parent=5 // pred_check_branch
        %208 = sbr.rel (%p205) target = $region12
      $region11: #{tpu_custom_call.1} parent=5 // pred_region
        %s209 = ssub.s32 %s14, 1
        // Predicated region
        $region13: #{tpu_custom_call.1} parent=11 // pred_check
          %p210 = pneg %p89
        $region14: #{tpu_custom_call.1} parent=11 // pred_check_branch
          %212 = sbr.rel (%p210) target = $region16
        $region15: #{tpu_custom_call.1} parent=11 // pred_region
          %s213 = smul.u32 2, %s26
          %p214 = scmp.lt.s32.totalorder %s213, 1
          %s215 = scalar_select %p214, %s213, 1
          %p216 = scmp.lt.s32.totalorder %s25, 0
          %s217 = scalar_select %p216, %s25, 0
          %s218 = sadd.s32 %s217, %s215
          %s219 = smul.addr %s218, 4
          %s220 = scalar_lea.vmem %s1, %s219
          %s221 = smul.u32 2, %s26
        $region16: #{tpu_custom_call.1} parent=11 // pred_fallthru
          _
        // Predicated region
        $region17: #{tpu_custom_call.1} parent=11 // pred_check
          %p222 = pneg %p115
        $region18: #{tpu_custom_call.1} parent=11 // pred_check_branch
          %224 = sbr.rel (%p222) target = $region20
        $region19: #{tpu_custom_call.1} parent=11 // pred_region
          %p225 = scmp.lt.s32.totalorder %s25, 0
          %s226 = scalar_select %p225, %s25, 0
          %s227 = scalar_lea.vmem %s2, %s226
        $region20: #{tpu_custom_call.1} parent=11 // pred_fallthru
          _
        // Predicated region
        $region21: #{tpu_custom_call.1} parent=11 // pred_check
          %p228 = pneg %p141
        $region22: #{tpu_custom_call.1} parent=11 // pred_check_branch
          %230 = sbr.rel (%p228) target = $region24
        $region23: #{tpu_custom_call.1} parent=11 // pred_region
          %p231 = scmp.lt.s32.totalorder %s25, 0
          %s232 = scalar_select %p231, %s25, 0
          %s233 = scalar_lea.vmem %s3, %s232
        $region24: #{tpu_custom_call.1} parent=11 // pred_fallthru
          _
        // Predicated region
        $region25: #{tpu_custom_call.1} parent=11 // pred_check
          %p234 = pneg %p167
        $region26: #{tpu_custom_call.1} parent=11 // pred_check_branch
          %236 = sbr.rel (%p234) target = $region28
        $region27: #{tpu_custom_call.1} parent=11 // pred_region
          %p237 = scmp.lt.s32.totalorder %s25, 0
          %s238 = scalar_select %p237, %s25, 0
          %s239 = scalar_lea.vmem %s4, %s238
        $region28: #{tpu_custom_call.1} parent=11 // pred_fallthru
          _
      $region12: #{tpu_custom_call.1} parent=5 // pred_fallthru
        _
      %p240 = scmp.lt.s32.totalorder %s14, 179
      // Predicated region
      $region29: #{tpu_custom_call.1} parent=5 // pred_check
        %p241 = pneg %p240
      $region30: #{tpu_custom_call.1} parent=5 // pred_check_branch
        %243 = sbr.rel (%p241) target = $region32
      $region31: #{tpu_custom_call.1} parent=5 // pred_region
        // Predicated region
        $region33: #{tpu_custom_call.1} parent=31 // pred_check
          %p244 = pneg %p55
        $region34: #{tpu_custom_call.1} parent=31 // pred_check_branch
          %246 = sbr.rel (%p244) target = $region36
        $region35: #{tpu_custom_call.1} parent=31 // pred_region
          %s247 = sand.u32 %s45, 1
          %s248 = scalar_lea.sflag [#allocation4], %s247
          %s249 = sand.u32 %s45, 1
          %s250 = smul.addr %s249, 256
          %s251 = scalar_lea.vmem [#allocation3], %s250
          %s252 = smul.u32 64, %s21
          %s253 = ssub.s32 11449, %s252
          %p254 = scmp.lt.s32.totalorder %s253, 64
          %s255 = scalar_select %p254, %s253, 64
          %s256 = smul.u32 64, %s255
          %s258 = ssub.s32 4096, %s256
          %259 = vsyncadd %s248, %s258
          %p260 = scmp.ne.s32.totalorder 0, %s256
          %s261 = sadd.s32 %s23, %s252
          %s262 = smul.addr %s261, 64
          %s263 = scalar_lea.hbm %s0, %s262
          %s264 = smul.u32 4, %s255
          %s265 = sshll.u32 %s251, 4
          %s266 = int_to_ptr.vmem [resolvable:$true] %s265
          %s267 = sshll.u32 %s264, 4
          %271 = dma.hbm_to_vmem [thread:$0]  (%p260), %s263, %s267, %s266, %s248, 64, 64, 4
        $region36: #{tpu_custom_call.1} parent=31 // pred_fallthru
          _
      $region32: #{tpu_custom_call.1} parent=5 // pred_fallthru
        _
      %p272 = scmp.le.s32.totalorder 1, %s14
      %p273 = scmp.lt.s32.totalorder %s14, 180
      %p274 = pnand %p272, %p273
      %p275 = pneg %p274
      // Predicated region
      $region37: #{tpu_custom_call.1} parent=5 // pred_check
        _
      $region38: #{tpu_custom_call.1} parent=5 // pred_check_branch
        %277 = sbr.rel (%p274) target = $region40
      $region39: #{tpu_custom_call.1} parent=5 // pred_region
        %s278 = ssub.s32 %s14, 1
        %s279 = sand.u32 %s48, 1
        %s280 = scalar_lea.sflag [#allocation4], %s279
        %s281 = sand.u32 %s48, 1
        %s282 = smul.addr %s281, 256
        %s283 = scalar_lea.vmem [#allocation3], %s282
        // Predicated region
        $region41: #{tpu_custom_call.1} parent=39 // pred_check
          %p284 = pneg %p61
        $region42: #{tpu_custom_call.1} parent=39 // pred_check_branch
          %286 = sbr.rel (%p284) target = $region44
        $region43: #{tpu_custom_call.1} parent=39 // pred_region
          %287 = dma.done %s280, 4096
        $region44: #{tpu_custom_call.1} parent=39 // pred_fallthru
          _
        %s288 = sand.u32 %s48, 1
        %s289 = scalar_lea.sflag [#allocation4], %s288
        %s290 = sand.u32 %s48, 1
        %s291 = smul.addr %s290, 256
        %s292 = scalar_lea.vmem [#allocation3], %s291
        %p293 = pneg %p61
        %p294 = pneg %p58
        %s295 = smul.u32 2, %s26
        %p296 = scmp.lt.s32.totalorder %s295, 1
        %s297 = scalar_select %p296, %s295, 1
        %p298 = scmp.lt.s32.totalorder %s25, 0
        %s299 = scalar_select %p298, %s25, 0
        %s300 = sadd.s32 %s299, %s297
        %s301 = smul.addr %s300, 4
        %s302 = scalar_lea.vmem %s1, %s301
        %p303 = pneg %p89
        %p304 = pneg %p86
        %p305 = scmp.lt.s32.totalorder %s25, 0
        %s306 = scalar_select %p305, %s25, 0
        %s307 = scalar_lea.vmem %s2, %s306
        %p308 = pneg %p115
        %p309 = pneg %p112
        %p310 = scmp.lt.s32.totalorder %s25, 0
        %s311 = scalar_select %p310, %s25, 0
        %s312 = scalar_lea.vmem %s3, %s311
        %p313 = pneg %p141
        %p314 = pneg %p138
        %p315 = scmp.lt.s32.totalorder %s25, 0
        %s316 = scalar_select %p315, %s25, 0
        %s317 = scalar_lea.vmem %s4, %s316
        %p318 = pneg %p167
        %p319 = pneg %p164
        %p320 = pneg %p195
        %p321 = pneg %p192
        %s322 = sand.u32 %s182, 1
        %s323 = sand.u32 %s182, 1
        %s324 = smul.addr %s323, 256
        %s325 = scalar_lea.vmem [#allocation5], %s324
        %s326 = smul.u32 64, %s24
        %s327 = ssub.s32 11449, %s326
        %p328 = scmp.lt.s32.totalorder %s327, 64
        %s329 = scalar_select %p328, %s327, 64
        %s330 = smul.u32 64, %s329
        %s331 = smul.u32 2, %s26
        %p332 = scmp.lt.s32.totalorder %s331, 1
        %s333 = scalar_select %p332, %s331, 1
        %p334 = scmp.lt.s32.totalorder %s25, 0
        %s335 = scalar_select %p334, %s25, 0
        %s336 = sadd.s32 %s335, %s333
        %s337 = smul.addr %s336, 4
        %s338 = scalar_lea.vmem %s1, %s337
        %s339 = smul.u32 2, %s26
        %p340 = scmp.lt.s32.totalorder %s25, 0
        %s341 = scalar_select %p340, %s25, 0
        %s342 = scalar_lea.vmem %s2, %s341
        %p343 = scmp.lt.s32.totalorder %s25, 0
        %s344 = scalar_select %p343, %s25, 0
        %s345 = scalar_lea.vmem %s3, %s344
        %p346 = scmp.lt.s32.totalorder %s25, 0
        %s347 = scalar_select %p346, %s25, 0
        %s348 = scalar_lea.vmem %s4, %s347
        %s349 = smul.u32 64, %s24
        %s350 = ssub.s32 11449, %s349
        %p351 = scmp.lt.s32.totalorder %s350, 64
        %s352 = scalar_select %p351, %s350, 64
        %s353 = smul.u32 64, %s352
        %p355 = scmp.eq.s32.totalorder %s26, 0
        // Predicated region
        $region45: #{tpu_custom_call.1} parent=39 // pred_check
          %p356 = pneg %p355
        $region46: #{tpu_custom_call.1} parent=39 // pred_check_branch
          %358 = sbr.rel (%p356) target = $region48
        $region47: #{tpu_custom_call.1} parent=39 // pred_region
          %vm359 = vcmask 523264
          %360 = vst.msk [vmem:[#allocation2] sm:$0xff] %vm359, 0.0
          %361 = vst.msk [vmem:[#allocation2 + $0x8] sm:$0xff] %vm359, 0.0
          %362 = vst.msk [vmem:[#allocation2 + $0x10] sm:$0xff] %vm359, 0.0
          %363 = vst.msk [vmem:[#allocation2 + $0x18] sm:$0xff] %vm359, 0.0
          %364 = vst.msk [vmem:[#allocation2 + $0x20] sm:$0xff] %vm359, 0.0
          %365 = vst.msk [vmem:[#allocation2 + $0x28] sm:$0xff] %vm359, 0.0
          %366 = vst.msk [vmem:[#allocation2 + $0x30] sm:$0xff] %vm359, 0.0
          %367 = vst.msk [vmem:[#allocation2 + $0x38] sm:$0xff] %vm359, 0.0
          %368 = vst.msk [vmem:[#allocation2 + $0x40] sm:$0xff] %vm359, 0.0
          %369 = vst.msk [vmem:[#allocation2 + $0x48] sm:$0xff] %vm359, 0.0
          %370 = vst.msk [vmem:[#allocation2 + $0x50] sm:$0xff] %vm359, 0.0
          %371 = vst.msk [vmem:[#allocation2 + $0x58] sm:$0xff] %vm359, 0.0
          %372 = vst.msk [vmem:[#allocation2 + $0x60] sm:$0xff] %vm359, 0.0
          %373 = vst.msk [vmem:[#allocation2 + $0x68] sm:$0xff] %vm359, 0.0
          %374 = vst.msk [vmem:[#allocation2 + $0x70] sm:$0xff] %vm359, 0.0
          %375 = vst.msk [vmem:[#allocation2 + $0x78] sm:$0xff] %vm359, 0.0
          %376 = vst.msk [vmem:[#allocation2 + $0x80] sm:$0xff] %vm359, 0.0
          %377 = vst.msk [vmem:[#allocation2 + $0x88] sm:$0xff] %vm359, 0.0
          %378 = vst.msk [vmem:[#allocation2 + $0x90] sm:$0xff] %vm359, 0.0
          %379 = vst.msk [vmem:[#allocation2 + $0x98] sm:$0xff] %vm359, 0.0
          %380 = vst.msk [vmem:[#allocation2 + $0xa0] sm:$0xff] %vm359, 0.0
          %381 = vst.msk [vmem:[#allocation2 + $0xa8] sm:$0xff] %vm359, 0.0
          %382 = vst.msk [vmem:[#allocation2 + $0xb0] sm:$0xff] %vm359, 0.0
          %383 = vst.msk [vmem:[#allocation2 + $0xb8] sm:$0xff] %vm359, 0.0
          %384 = vst.msk [vmem:[#allocation2 + $0xc0] sm:$0xff] %vm359, 0.0
          %385 = vst.msk [vmem:[#allocation2 + $0xc8] sm:$0xff] %vm359, 0.0
          %386 = vst.msk [vmem:[#allocation2 + $0xd0] sm:$0xff] %vm359, 0.0
          %387 = vst.msk [vmem:[#allocation2 + $0xd8] sm:$0xff] %vm359, 0.0
          %388 = vst.msk [vmem:[#allocation2 + $0xe0] sm:$0xff] %vm359, 0.0
          %389 = vst.msk [vmem:[#allocation2 + $0xe8] sm:$0xff] %vm359, 0.0
          %390 = vst.msk [vmem:[#allocation2 + $0xf0] sm:$0xff] %vm359, 0.0
          %391 = vst.msk [vmem:[#allocation2 + $0xf8] sm:$0xff] %vm359, 0.0
          %392 = vst.msk [vmem:[#allocation2 + $0x100] sm:$0xff] %vm359, 0.0
          %393 = vst.msk [vmem:[#allocation2 + $0x108] sm:$0xff] %vm359, 0.0
          %394 = vst.msk [vmem:[#allocation2 + $0x110] sm:$0xff] %vm359, 0.0
          %395 = vst.msk [vmem:[#allocation2 + $0x118] sm:$0xff] %vm359, 0.0
          %396 = vst.msk [vmem:[#allocation2 + $0x120] sm:$0xff] %vm359, 0.0
          %397 = vst.msk [vmem:[#allocation2 + $0x128] sm:$0xff] %vm359, 0.0
          %398 = vst.msk [vmem:[#allocation2 + $0x130] sm:$0xff] %vm359, 0.0
          %399 = vst.msk [vmem:[#allocation2 + $0x138] sm:$0xff] %vm359, 0.0
          %400 = vst.msk [vmem:[#allocation2 + $0x140] sm:$0xff] %vm359, 0.0
          %401 = vst.msk [vmem:[#allocation2 + $0x148] sm:$0xff] %vm359, 0.0
          %402 = vst.msk [vmem:[#allocation2 + $0x150] sm:$0xff] %vm359, 0.0
          %403 = vst.msk [vmem:[#allocation2 + $0x158] sm:$0xff] %vm359, 0.0
          %404 = vst.msk [vmem:[#allocation2 + $0x160] sm:$0xff] %vm359, 0.0
          %405 = vst.msk [vmem:[#allocation2 + $0x168] sm:$0xff] %vm359, 0.0
          %406 = vst.msk [vmem:[#allocation2 + $0x170] sm:$0xff] %vm359, 0.0
          %407 = vst.msk [vmem:[#allocation2 + $0x178] sm:$0xff] %vm359, 0.0
          %408 = vst.msk [vmem:[#allocation2 + $0x180] sm:$0xff] %vm359, 0.0
          %409 = vst.msk [vmem:[#allocation2 + $0x188] sm:$0xff] %vm359, 0.0
          %410 = vst.msk [vmem:[#allocation2 + $0x190] sm:$0xff] %vm359, 0.0
          %411 = vst.msk [vmem:[#allocation2 + $0x198] sm:$0xff] %vm359, 0.0
          %412 = vst.msk [vmem:[#allocation2 + $0x1a0] sm:$0xff] %vm359, 0.0
          %413 = vst.msk [vmem:[#allocation2 + $0x1a8] sm:$0xff] %vm359, 0.0
          %414 = vst.msk [vmem:[#allocation2 + $0x1b0] sm:$0xff] %vm359, 0.0
          %415 = vst.msk [vmem:[#allocation2 + $0x1b8] sm:$0xff] %vm359, 0.0
          %416 = vst.msk [vmem:[#allocation2 + $0x1c0] sm:$0xff] %vm359, 0.0
          %417 = vst.msk [vmem:[#allocation2 + $0x1c8] sm:$0xff] %vm359, 0.0
          %418 = vst.msk [vmem:[#allocation2 + $0x1d0] sm:$0xff] %vm359, 0.0
          %419 = vst.msk [vmem:[#allocation2 + $0x1d8] sm:$0xff] %vm359, 0.0
          %420 = vst.msk [vmem:[#allocation2 + $0x1e0] sm:$0xff] %vm359, 0.0
          %421 = vst.msk [vmem:[#allocation2 + $0x1e8] sm:$0xff] %vm359, 0.0
          %422 = vst.msk [vmem:[#allocation2 + $0x1f0] sm:$0xff] %vm359, 0.0
          %423 = vst.msk [vmem:[#allocation2 + $0x1f8] sm:$0xff] %vm359, 0.0
        $region48: #{tpu_custom_call.1} parent=39 // pred_fallthru
          _
        %v424 = vld [vmem:[#allocation2] sm:$0xff]
        %v425 = vld [vmem:[#allocation2 + $0x8] sm:$0xff]
        %v426 = vld [vmem:[#allocation2 + $0x10] sm:$0xff]
        %v427 = vld [vmem:[#allocation2 + $0x18] sm:$0xff]
        %v428 = vld [vmem:[#allocation2 + $0x20] sm:$0xff]
        %v429 = vld [vmem:[#allocation2 + $0x28] sm:$0xff]
        %v430 = vld [vmem:[#allocation2 + $0x30] sm:$0xff]
        %v431 = vld [vmem:[#allocation2 + $0x38] sm:$0xff]
        %v432 = vld [vmem:[#allocation2 + $0x40] sm:$0xff]
        %v433 = vld [vmem:[#allocation2 + $0x48] sm:$0xff]
        %v434 = vld [vmem:[#allocation2 + $0x50] sm:$0xff]
        %v435 = vld [vmem:[#allocation2 + $0x58] sm:$0xff]
        %v436 = vld [vmem:[#allocation2 + $0x60] sm:$0xff]
        %v437 = vld [vmem:[#allocation2 + $0x68] sm:$0xff]
        %v438 = vld [vmem:[#allocation2 + $0x70] sm:$0xff]
        %v439 = vld [vmem:[#allocation2 + $0x78] sm:$0xff]
        %v440 = vld [vmem:[#allocation2 + $0x80] sm:$0xff]
        %v441 = vld [vmem:[#allocation2 + $0x88] sm:$0xff]
        %v442 = vld [vmem:[#allocation2 + $0x90] sm:$0xff]
        %v443 = vld [vmem:[#allocation2 + $0x98] sm:$0xff]
        %v444 = vld [vmem:[#allocation2 + $0xa0] sm:$0xff]
        %v445 = vld [vmem:[#allocation2 + $0xa8] sm:$0xff]
        %v446 = vld [vmem:[#allocation2 + $0xb0] sm:$0xff]
        %v447 = vld [vmem:[#allocation2 + $0xb8] sm:$0xff]
        %v448 = vld [vmem:[#allocation2 + $0xc0] sm:$0xff]
        %v449 = vld [vmem:[#allocation2 + $0xc8] sm:$0xff]
        %v450 = vld [vmem:[#allocation2 + $0xd0] sm:$0xff]
        %v451 = vld [vmem:[#allocation2 + $0xd8] sm:$0xff]
        %v452 = vld [vmem:[#allocation2 + $0xe0] sm:$0xff]
        %v453 = vld [vmem:[#allocation2 + $0xe8] sm:$0xff]
        %v454 = vld [vmem:[#allocation2 + $0xf0] sm:$0xff]
        %v455 = vld [vmem:[#allocation2 + $0xf8] sm:$0xff]
        %v456 = vld [vmem:[#allocation2 + $0x100] sm:$0xff]
        %v457 = vld [vmem:[#allocation2 + $0x108] sm:$0xff]
        %v458 = vld [vmem:[#allocation2 + $0x110] sm:$0xff]
        %v459 = vld [vmem:[#allocation2 + $0x118] sm:$0xff]
        %v460 = vld [vmem:[#allocation2 + $0x120] sm:$0xff]
        %v461 = vld [vmem:[#allocation2 + $0x128] sm:$0xff]
        %v462 = vld [vmem:[#allocation2 + $0x130] sm:$0xff]
        %v463 = vld [vmem:[#allocation2 + $0x138] sm:$0xff]
        %v464 = vld [vmem:[#allocation2 + $0x140] sm:$0xff]
        %v465 = vld [vmem:[#allocation2 + $0x148] sm:$0xff]
        %v466 = vld [vmem:[#allocation2 + $0x150] sm:$0xff]
        %v467 = vld [vmem:[#allocation2 + $0x158] sm:$0xff]
        %v468 = vld [vmem:[#allocation2 + $0x160] sm:$0xff]
        %v469 = vld [vmem:[#allocation2 + $0x168] sm:$0xff]
        %v470 = vld [vmem:[#allocation2 + $0x170] sm:$0xff]
        %v471 = vld [vmem:[#allocation2 + $0x178] sm:$0xff]
        %v472 = vld [vmem:[#allocation2 + $0x180] sm:$0xff]
        %v473 = vld [vmem:[#allocation2 + $0x188] sm:$0xff]
        %v474 = vld [vmem:[#allocation2 + $0x190] sm:$0xff]
        %v475 = vld [vmem:[#allocation2 + $0x198] sm:$0xff]
        %v476 = vld [vmem:[#allocation2 + $0x1a0] sm:$0xff]
        %v477 = vld [vmem:[#allocation2 + $0x1a8] sm:$0xff]
        %v478 = vld [vmem:[#allocation2 + $0x1b0] sm:$0xff]
        %v479 = vld [vmem:[#allocation2 + $0x1b8] sm:$0xff]
        %v480 = vld [vmem:[#allocation2 + $0x1c0] sm:$0xff]
        %v481 = vld [vmem:[#allocation2 + $0x1c8] sm:$0xff]
        %v482 = vld [vmem:[#allocation2 + $0x1d0] sm:$0xff]
        %v483 = vld [vmem:[#allocation2 + $0x1d8] sm:$0xff]
        %v484 = vld [vmem:[#allocation2 + $0x1e0] sm:$0xff]
        %v485 = vld [vmem:[#allocation2 + $0x1e8] sm:$0xff]
        %v486 = vld [vmem:[#allocation2 + $0x1f0] sm:$0xff]
        %v487 = vld [vmem:[#allocation2 + $0x1f8] sm:$0xff]
        %v488 = vld [vmem:[%s283] sm:$0xf]
        %v489 = vld [vmem:[%s283 + $0x4] sm:$0xf]
        %v490 = vld [vmem:[%s283 + $0x8] sm:$0xf]
        %v491 = vld [vmem:[%s283 + $0xc] sm:$0xf]
        %v492 = vld [vmem:[%s283 + $0x10] sm:$0xf]
        %v493 = vld [vmem:[%s283 + $0x14] sm:$0xf]
        %v494 = vld [vmem:[%s283 + $0x18] sm:$0xf]
        %v495 = vld [vmem:[%s283 + $0x1c] sm:$0xf]
        %v496 = vld [vmem:[%s283 + $0x20] sm:$0xf]
        %v497 = vld [vmem:[%s283 + $0x24] sm:$0xf]
        %v498 = vld [vmem:[%s283 + $0x28] sm:$0xf]
        %v499 = vld [vmem:[%s283 + $0x2c] sm:$0xf]
        %v500 = vld [vmem:[%s283 + $0x30] sm:$0xf]
        %v501 = vld [vmem:[%s283 + $0x34] sm:$0xf]
        %v502 = vld [vmem:[%s283 + $0x38] sm:$0xf]
        %v503 = vld [vmem:[%s283 + $0x3c] sm:$0xf]
        %v504 = vld [vmem:[%s283 + $0x40] sm:$0xf]
        %v505 = vld [vmem:[%s283 + $0x44] sm:$0xf]
        %v506 = vld [vmem:[%s283 + $0x48] sm:$0xf]
        %v507 = vld [vmem:[%s283 + $0x4c] sm:$0xf]
        %v508 = vld [vmem:[%s283 + $0x50] sm:$0xf]
        %v509 = vld [vmem:[%s283 + $0x54] sm:$0xf]
        %v510 = vld [vmem:[%s283 + $0x58] sm:$0xf]
        %v511 = vld [vmem:[%s283 + $0x5c] sm:$0xf]
        %v512 = vld [vmem:[%s283 + $0x60] sm:$0xf]
        %v513 = vld [vmem:[%s283 + $0x64] sm:$0xf]
        %v514 = vld [vmem:[%s283 + $0x68] sm:$0xf]
        %v515 = vld [vmem:[%s283 + $0x6c] sm:$0xf]
        %v516 = vld [vmem:[%s283 + $0x70] sm:$0xf]
        %v517 = vld [vmem:[%s283 + $0x74] sm:$0xf]
        %v518 = vld [vmem:[%s283 + $0x78] sm:$0xf]
        %v519 = vld [vmem:[%s283 + $0x7c] sm:$0xf]
        %v520 = vld [vmem:[%s283 + $0x80] sm:$0xf]
        %v521 = vld [vmem:[%s283 + $0x84] sm:$0xf]
        %v522 = vld [vmem:[%s283 + $0x88] sm:$0xf]
        %v523 = vld [vmem:[%s283 + $0x8c] sm:$0xf]
        %v524 = vld [vmem:[%s283 + $0x90] sm:$0xf]
        %v525 = vld [vmem:[%s283 + $0x94] sm:$0xf]
        %v526 = vld [vmem:[%s283 + $0x98] sm:$0xf]
        %v527 = vld [vmem:[%s283 + $0x9c] sm:$0xf]
        %v528 = vld [vmem:[%s283 + $0xa0] sm:$0xf]
        %v529 = vld [vmem:[%s283 + $0xa4] sm:$0xf]
        %v530 = vld [vmem:[%s283 + $0xa8] sm:$0xf]
        %v531 = vld [vmem:[%s283 + $0xac] sm:$0xf]
        %v532 = vld [vmem:[%s283 + $0xb0] sm:$0xf]
        %v533 = vld [vmem:[%s283 + $0xb4] sm:$0xf]
        %v534 = vld [vmem:[%s283 + $0xb8] sm:$0xf]
        %v535 = vld [vmem:[%s283 + $0xbc] sm:$0xf]
        %v536 = vld [vmem:[%s283 + $0xc0] sm:$0xf]
        %v537 = vld [vmem:[%s283 + $0xc4] sm:$0xf]
        %v538 = vld [vmem:[%s283 + $0xc8] sm:$0xf]
        %v539 = vld [vmem:[%s283 + $0xcc] sm:$0xf]
        %v540 = vld [vmem:[%s283 + $0xd0] sm:$0xf]
        %v541 = vld [vmem:[%s283 + $0xd4] sm:$0xf]
        %v542 = vld [vmem:[%s283 + $0xd8] sm:$0xf]
        %v543 = vld [vmem:[%s283 + $0xdc] sm:$0xf]
        %v544 = vld [vmem:[%s283 + $0xe0] sm:$0xf]
        %v545 = vld [vmem:[%s283 + $0xe4] sm:$0xf]
        %v546 = vld [vmem:[%s283 + $0xe8] sm:$0xf]
        %v547 = vld [vmem:[%s283 + $0xec] sm:$0xf]
        %v548 = vld [vmem:[%s283 + $0xf0] sm:$0xf]
        %v549 = vld [vmem:[%s283 + $0xf4] sm:$0xf]
        %v550 = vld [vmem:[%s283 + $0xf8] sm:$0xf]
        %v551 = vld [vmem:[%s283 + $0xfc] sm:$0xf]
        %v552 = vld [vmem:[%s338] sm:$0xf]
        %v553 = vld [vmem:[%s338 + $0x4] sm:$0x1]
        %v618 = vunpack.c.l.b16 %v488
        %v619 = vunpack.c.l.b16 %v489
        %v620 = vunpack.c.l.b16 %v490
        %v621 = vunpack.c.l.b16 %v491
        %v622 = vunpack.c.l.b16 %v492
        %v623 = vunpack.c.l.b16 %v493
        %v624 = vunpack.c.l.b16 %v494
        %v625 = vunpack.c.l.b16 %v495
        %v626 = vunpack.c.l.b16 %v496
        %v627 = vunpack.c.l.b16 %v497
        %v628 = vunpack.c.l.b16 %v498
        %v629 = vunpack.c.l.b16 %v499
        %v630 = vunpack.c.l.b16 %v500
        %v631 = vunpack.c.l.b16 %v501
        %v632 = vunpack.c.l.b16 %v502
        %v633 = vunpack.c.l.b16 %v503
        %v634 = vunpack.c.l.b16 %v504
        %v635 = vunpack.c.l.b16 %v505
        %v636 = vunpack.c.l.b16 %v506
        %v637 = vunpack.c.l.b16 %v507
        %v638 = vunpack.c.l.b16 %v508
        %v639 = vunpack.c.l.b16 %v509
        %v640 = vunpack.c.l.b16 %v510
        %v641 = vunpack.c.l.b16 %v511
        %v642 = vunpack.c.l.b16 %v512
        %v643 = vunpack.c.l.b16 %v513
        %v644 = vunpack.c.l.b16 %v514
        %v645 = vunpack.c.l.b16 %v515
        %v646 = vunpack.c.l.b16 %v516
        %v647 = vunpack.c.l.b16 %v517
        %v648 = vunpack.c.l.b16 %v518
        %v649 = vunpack.c.l.b16 %v519
        %v650 = vunpack.c.l.b16 %v520
        %v651 = vunpack.c.l.b16 %v521
        %v652 = vunpack.c.l.b16 %v522
        %v653 = vunpack.c.l.b16 %v523
        %v654 = vunpack.c.l.b16 %v524
        %v655 = vunpack.c.l.b16 %v525
        %v656 = vunpack.c.l.b16 %v526
        %v657 = vunpack.c.l.b16 %v527
        %v658 = vunpack.c.l.b16 %v528
        %v659 = vunpack.c.l.b16 %v529
        %v660 = vunpack.c.l.b16 %v530
        %v661 = vunpack.c.l.b16 %v531
        %v662 = vunpack.c.l.b16 %v532
        %v663 = vunpack.c.l.b16 %v533
        %v664 = vunpack.c.l.b16 %v534
        %v665 = vunpack.c.l.b16 %v535
        %v666 = vunpack.c.l.b16 %v536
        %v667 = vunpack.c.l.b16 %v537
        %v668 = vunpack.c.l.b16 %v538
        %v669 = vunpack.c.l.b16 %v539
        %v670 = vunpack.c.l.b16 %v540
        %v671 = vunpack.c.l.b16 %v541
        %v672 = vunpack.c.l.b16 %v542
        %v673 = vunpack.c.l.b16 %v543
        %v674 = vunpack.c.l.b16 %v544
        %v675 = vunpack.c.l.b16 %v545
        %v676 = vunpack.c.l.b16 %v546
        %v677 = vunpack.c.l.b16 %v547
        %v678 = vunpack.c.l.b16 %v548
        %v679 = vunpack.c.l.b16 %v549
        %v680 = vunpack.c.l.b16 %v550
        %v681 = vunpack.c.l.b16 %v551
        %v682 = vpack.c.b16 %v619, %v618
        %v683 = vpack.c.b16 %v621, %v620
        %v684 = vpack.c.b16 %v623, %v622
        %v685 = vpack.c.b16 %v625, %v624
        %v686 = vpack.c.b16 %v627, %v626
        %v687 = vpack.c.b16 %v629, %v628
        %v688 = vpack.c.b16 %v631, %v630
        %v689 = vpack.c.b16 %v633, %v632
        %v690 = vpack.c.b16 %v635, %v634
        %v691 = vpack.c.b16 %v637, %v636
        %v692 = vpack.c.b16 %v639, %v638
        %v693 = vpack.c.b16 %v641, %v640
        %v694 = vpack.c.b16 %v643, %v642
        %v695 = vpack.c.b16 %v645, %v644
        %v696 = vpack.c.b16 %v647, %v646
        %v697 = vpack.c.b16 %v649, %v648
        %v698 = vpack.c.b16 %v651, %v650
        %v699 = vpack.c.b16 %v653, %v652
        %v700 = vpack.c.b16 %v655, %v654
        %v701 = vpack.c.b16 %v657, %v656
        %v702 = vpack.c.b16 %v659, %v658
        %v703 = vpack.c.b16 %v661, %v660
        %v704 = vpack.c.b16 %v663, %v662
        %v705 = vpack.c.b16 %v665, %v664
        %v706 = vpack.c.b16 %v667, %v666
        %v707 = vpack.c.b16 %v669, %v668
        %v708 = vpack.c.b16 %v671, %v670
        %v709 = vpack.c.b16 %v673, %v672
        %v710 = vpack.c.b16 %v675, %v674
        %v711 = vpack.c.b16 %v677, %v676
        %v712 = vpack.c.b16 %v679, %v678
        %v713 = vpack.c.b16 %v681, %v680
        %v716 = vunpack.c.l.b16 %v552
        %v717 = vunpack.c.l.b16 %v553
        %v718 = vpack.c.b16 %v717, %v716
        %vm719 = vcmask 72704
        %v721 = vsel %vm719, %v682, 0
        %v724 = vsel %vm719, %v683, 0
        %v727 = vsel %vm719, %v684, 0
        %v730 = vsel %vm719, %v685, 0
        %v733 = vsel %vm719, %v686, 0
        %v736 = vsel %vm719, %v687, 0
        %v739 = vsel %vm719, %v688, 0
        %v742 = vsel %vm719, %v689, 0
        %v745 = vsel %vm719, %v690, 0
        %v748 = vsel %vm719, %v691, 0
        %v751 = vsel %vm719, %v692, 0
        %v754 = vsel %vm719, %v693, 0
        %v757 = vsel %vm719, %v694, 0
        %v760 = vsel %vm719, %v695, 0
        %v763 = vsel %vm719, %v696, 0
        %v766 = vsel %vm719, %v697, 0
        %v769 = vsel %vm719, %v698, 0
        %v772 = vsel %vm719, %v699, 0
        %v775 = vsel %vm719, %v700, 0
        %v778 = vsel %vm719, %v701, 0
        %v781 = vsel %vm719, %v702, 0
        %v784 = vsel %vm719, %v703, 0
        %v787 = vsel %vm719, %v704, 0
        %v790 = vsel %vm719, %v705, 0
        %v793 = vsel %vm719, %v706, 0
        %v796 = vsel %vm719, %v707, 0
        %v799 = vsel %vm719, %v708, 0
        %v802 = vsel %vm719, %v709, 0
        %v805 = vsel %vm719, %v710, 0
        %v808 = vsel %vm719, %v711, 0
        %v811 = vsel %vm719, %v712, 0
        %v814 = vsel %vm719, %v713, 0
        %vm816 = vcmask 1043456
        %vm817 = vcmask 1044480
        %v818 = vsel %vm816, 4294967295, 65535
        %v819 = vsel %vm817, %v818, 0
        %v821 = vand.u32 %v718, %v819
        %823 = vmatprep.subr.bf16.mxu0 0
        %824 = vmatpush1.bf16.msra.mxu0 %v821
        %825 = vmatprep.subr.bf16.mxu0 0
        %826 = vmatpush1.bf16.msra.mxu0 0
        %827 = vmatprep.subr.bf16.mxu0 0
        %828 = vmatpush1.bf16.msra.mxu0 0
        %829 = vmatprep.subr.bf16.mxu0 0
        %830 = vmatpush1.bf16.msra.mxu0 0
        %831 = vmatprep.subr.bf16.mxu0 0
        %832 = vmatpush1.bf16.msra.mxu0 0
        %833 = vmatprep.subr.bf16.mxu0 0
        %834 = vmatpush1.bf16.msra.mxu0 0
        %835 = vmatprep.subr.bf16.mxu0 0
        %836 = vmatpush1.bf16.msra.mxu0 0
        %837 = vmatprep.subr.bf16.mxu0 0
        %838 = vmatpush1.bf16.msra.mxu0 0
        %839 = vmatprep.subr.bf16.mxu0 0
        %840 = vmatpush1.bf16.msra.mxu0 0
        %841 = vmatprep.subr.bf16.mxu0 0
        %842 = vmatpush1.bf16.msra.mxu0 0
        %843 = vmatprep.subr.bf16.mxu0 0
        %844 = vmatpush1.bf16.msra.mxu0 0
        %845 = vmatprep.subr.bf16.mxu0 0
        %846 = vmatpush1.bf16.msra.mxu0 0
        %847 = vmatprep.subr.bf16.mxu0 0
        %848 = vmatpush1.bf16.msra.mxu0 0
        %849 = vmatprep.subr.bf16.mxu0 0
        %850 = vmatpush1.bf16.msra.mxu0 0
        %851 = vmatprep.subr.bf16.mxu0 0
        %852 = vmatpush1.bf16.msra.mxu0 0
        %853 = vmatprep.subr.bf16.mxu0 0
        %854 = vmatpush1.bf16.msra.mxu0 0
        %855 = vmatprep.mubr.bf16.mxu0 0
        %856 = vmatmul.mubr.bf16.gmra.mrb[0].mxu0 %v721
        %v857 = vpop.f32.mrb[0].mxu0
        %v858 = vadd.f32 0.0, %v857
        %v859 = vpop.f32.mrb[0].mxu0
        %v860 = vpop.f32.mrb[0].mxu0
        %v861 = vadd.f32 0.0, %v860
        %v862 = vpop.f32.mrb[0].mxu0
        %863 = vmatprep.mubr.bf16.mxu0 0
        %864 = vmatmul.mubr.bf16.gmra.mrb[0].mxu0 %v724
        %v865 = vpop.f32.mrb[0].mxu0
        %v866 = vadd.f32 0.0, %v865
        %v867 = vpop.f32.mrb[0].mxu0
        %v868 = vpop.f32.mrb[0].mxu0
        %v869 = vadd.f32 0.0, %v868
        %v870 = vpop.f32.mrb[0].mxu0
        %871 = vmatprep.mubr.bf16.mxu0 0
        %872 = vmatmul.mubr.bf16.gmra.mrb[0].mxu0 %v727
        %v873 = vpop.f32.mrb[0].mxu0
        %v874 = vadd.f32 0.0, %v873
        %v875 = vpop.f32.mrb[0].mxu0
        %v876 = vpop.f32.mrb[0].mxu0
        %v877 = vadd.f32 0.0, %v876
        %v878 = vpop.f32.mrb[0].mxu0
        %879 = vmatprep.mubr.bf16.mxu0 0
        %880 = vmatmul.mubr.bf16.gmra.mrb[0].mxu0 %v730
        %v881 = vpop.f32.mrb[0].mxu0
        %v882 = vadd.f32 0.0, %v881
        %v883 = vpop.f32.mrb[0].mxu0
        %v884 = vpop.f32.mrb[0].mxu0
        %v885 = vadd.f32 0.0, %v884
        %v886 = vpop.f32.mrb[0].mxu0
        %887 = vmatprep.mubr.bf16.mxu0 0
        %888 = vmatmul.mubr.bf16.gmra.mrb[0].mxu0 %v733
        %v889 = vpop.f32.mrb[0].mxu0
        %v890 = vadd.f32 0.0, %v889
        %v891 = vpop.f32.mrb[0].mxu0
        %v892 = vpop.f32.mrb[0].mxu0
        %v893 = vadd.f32 0.0, %v892
        %v894 = vpop.f32.mrb[0].mxu0
        %895 = vmatprep.mubr.bf16.mxu0 0
        %896 = vmatmul.mubr.bf16.gmra.mrb[0].mxu0 %v736
        %v897 = vpop.f32.mrb[0].mxu0
        %v898 = vadd.f32 0.0, %v897
        %v899 = vpop.f32.mrb[0].mxu0
        %v900 = vpop.f32.mrb[0].mxu0
        %v901 = vadd.f32 0.0, %v900
        %v902 = vpop.f32.mrb[0].mxu0
        %903 = vmatprep.mubr.bf16.mxu0 0
        %904 = vmatmul.mubr.bf16.gmra.mrb[0].mxu0 %v739
        %v905 = vpop.f32.mrb[0].mxu0
        %v906 = vadd.f32 0.0, %v905
        %v907 = vpop.f32.mrb[0].mxu0
        %v908 = vpop.f32.mrb[0].mxu0
        %v909 = vadd.f32 0.0, %v908
        %v910 = vpop.f32.mrb[0].mxu0
        %911 = vmatprep.mubr.bf16.mxu0 0
        %912 = vmatmul.mubr.bf16.gmra.mrb[0].mxu0 %v742
        %v913 = vpop.f32.mrb[0].mxu0
        %v914 = vadd.f32 0.0, %v913
        %v915 = vpop.f32.mrb[0].mxu0
        %v916 = vpop.f32.mrb[0].mxu0
        %v917 = vadd.f32 0.0, %v916
        %v918 = vpop.f32.mrb[0].mxu0
        %919 = vmatprep.mubr.bf16.mxu0 0
        %920 = vmatmul.mubr.bf16.gmra.mrb[0].mxu0 %v745
        %v921 = vpop.f32.mrb[0].mxu0
        %v922 = vadd.f32 0.0, %v921
        %v923 = vpop.f32.mrb[0].mxu0
        %v924 = vpop.f32.mrb[0].mxu0
        %v925 = vadd.f32 0.0, %v924
        %v926 = vpop.f32.mrb[0].mxu0
        %927 = vmatprep.mubr.bf16.mxu0 0
        %928 = vmatmul.mubr.bf16.gmra.mrb[0].mxu0 %v748
        %v929 = vpop.f32.mrb[0].mxu0
        %v930 = vadd.f32 0.0, %v929
        %v931 = vpop.f32.mrb[0].mxu0
        %v932 = vpop.f32.mrb[0].mxu0
        %v933 = vadd.f32 0.0, %v932
        %v934 = vpop.f32.mrb[0].mxu0
        %935 = vmatprep.mubr.bf16.mxu0 0
        %936 = vmatmul.mubr.bf16.gmra.mrb[0].mxu0 %v751
        %v937 = vpop.f32.mrb[0].mxu0
        %v938 = vadd.f32 0.0, %v937
        %v939 = vpop.f32.mrb[0].mxu0
        %v940 = vpop.f32.mrb[0].mxu0
        %v941 = vadd.f32 0.0, %v940
        %v942 = vpop.f32.mrb[0].mxu0
        %943 = vmatprep.mubr.bf16.mxu0 0
        %944 = vmatmul.mubr.bf16.gmra.mrb[0].mxu0 %v754
        %v945 = vpop.f32.mrb[0].mxu0
        %v946 = vadd.f32 0.0, %v945
        %v947 = vpop.f32.mrb[0].mxu0
        %v948 = vpop.f32.mrb[0].mxu0
        %v949 = vadd.f32 0.0, %v948
        %v950 = vpop.f32.mrb[0].mxu0
        %951 = vmatprep.mubr.bf16.mxu0 0
        %952 = vmatmul.mubr.bf16.gmra.mrb[0].mxu0 %v757
        %v953 = vpop.f32.mrb[0].mxu0
        %v954 = vadd.f32 0.0, %v953
        %v955 = vpop.f32.mrb[0].mxu0
        %v956 = vpop.f32.mrb[0].mxu0
        %v957 = vadd.f32 0.0, %v956
        %v958 = vpop.f32.mrb[0].mxu0
        %959 = vmatprep.mubr.bf16.mxu0 0
        %960 = vmatmul.mubr.bf16.gmra.mrb[0].mxu0 %v760
        %v961 = vpop.f32.mrb[0].mxu0
        %v962 = vadd.f32 0.0, %v961
        %v963 = vpop.f32.mrb[0].mxu0
        %v964 = vpop.f32.mrb[0].mxu0
        %v965 = vadd.f32 0.0, %v964
        %v966 = vpop.f32.mrb[0].mxu0
        %967 = vmatprep.mubr.bf16.mxu0 0
        %968 = vmatmul.mubr.bf16.gmra.mrb[0].mxu0 %v763
        %v969 = vpop.f32.mrb[0].mxu0
        %v970 = vadd.f32 0.0, %v969
        %v971 = vpop.f32.mrb[0].mxu0
        %v972 = vpop.f32.mrb[0].mxu0
        %v973 = vadd.f32 0.0, %v972
        %v974 = vpop.f32.mrb[0].mxu0
        %975 = vmatprep.mubr.bf16.mxu0 0
        %976 = vmatmul.mubr.bf16.gmra.mrb[0].mxu0 %v766
        %v977 = vpop.f32.mrb[0].mxu0
        %v978 = vadd.f32 0.0, %v977
        %v979 = vpop.f32.mrb[0].mxu0
        %v980 = vpop.f32.mrb[0].mxu0
        %v981 = vadd.f32 0.0, %v980
        %v982 = vpop.f32.mrb[0].mxu0
        %983 = vmatprep.mubr.bf16.mxu0 0
        %984 = vmatmul.mubr.bf16.gmra.mrb[0].mxu0 %v769
        %v985 = vpop.f32.mrb[0].mxu0
        %v986 = vadd.f32 0.0, %v985
        %v987 = vpop.f32.mrb[0].mxu0
        %v988 = vpop.f32.mrb[0].mxu0
        %v989 = vadd.f32 0.0, %v988
        %v990 = vpop.f32.mrb[0].mxu0
        %991 = vmatprep.mubr.bf16.mxu0 0
        %992 = vmatmul.mubr.bf16.gmra.mrb[0].mxu0 %v772
        %v993 = vpop.f32.mrb[0].mxu0
        %v994 = vadd.f32 0.0, %v993
        %v995 = vpop.f32.mrb[0].mxu0
        %v996 = vpop.f32.mrb[0].mxu0
        %v997 = vadd.f32 0.0, %v996
        %v998 = vpop.f32.mrb[0].mxu0
        %999 = vmatprep.mubr.bf16.mxu0 0
        %1000 = vmatmul.mubr.bf16.gmra.mrb[0].mxu0 %v775
        %v1001 = vpop.f32.mrb[0].mxu0
        %v1002 = vadd.f32 0.0, %v1001
        %v1003 = vpop.f32.mrb[0].mxu0
        %v1004 = vpop.f32.mrb[0].mxu0
        %v1005 = vadd.f32 0.0, %v1004
        %v1006 = vpop.f32.mrb[0].mxu0
        %1007 = vmatprep.mubr.bf16.mxu0 0
        %1008 = vmatmul.mubr.bf16.gmra.mrb[0].mxu0 %v778
        %v1009 = vpop.f32.mrb[0].mxu0
        %v1010 = vadd.f32 0.0, %v1009
        %v1011 = vpop.f32.mrb[0].mxu0
        %v1012 = vpop.f32.mrb[0].mxu0
        %v1013 = vadd.f32 0.0, %v1012
        %v1014 = vpop.f32.mrb[0].mxu0
        %1015 = vmatprep.mubr.bf16.mxu0 0
        %1016 = vmatmul.mubr.bf16.gmra.mrb[0].mxu0 %v781
        %v1017 = vpop.f32.mrb[0].mxu0
        %v1018 = vadd.f32 0.0, %v1017
        %v1019 = vpop.f32.mrb[0].mxu0
        %v1020 = vpop.f32.mrb[0].mxu0
        %v1021 = vadd.f32 0.0, %v1020
        %v1022 = vpop.f32.mrb[0].mxu0
        %1023 = vmatprep.mubr.bf16.mxu0 0
        %1024 = vmatmul.mubr.bf16.gmra.mrb[0].mxu0 %v784
        %v1025 = vpop.f32.mrb[0].mxu0
        %v1026 = vadd.f32 0.0, %v1025
        %v1027 = vpop.f32.mrb[0].mxu0
        %v1028 = vpop.f32.mrb[0].mxu0
        %v1029 = vadd.f32 0.0, %v1028
        %v1030 = vpop.f32.mrb[0].mxu0
        %1031 = vmatprep.mubr.bf16.mxu0 0
        %1032 = vmatmul.mubr.bf16.gmra.mrb[0].mxu0 %v787
        %v1033 = vpop.f32.mrb[0].mxu0
        %v1034 = vadd.f32 0.0, %v1033
        %v1035 = vpop.f32.mrb[0].mxu0
        %v1036 = vpop.f32.mrb[0].mxu0
        %v1037 = vadd.f32 0.0, %v1036
        %v1038 = vpop.f32.mrb[0].mxu0
        %1039 = vmatprep.mubr.bf16.mxu0 0
        %1040 = vmatmul.mubr.bf16.gmra.mrb[0].mxu0 %v790
        %v1041 = vpop.f32.mrb[0].mxu0
        %v1042 = vadd.f32 0.0, %v1041
        %v1043 = vpop.f32.mrb[0].mxu0
        %v1044 = vpop.f32.mrb[0].mxu0
        %v1045 = vadd.f32 0.0, %v1044
        %v1046 = vpop.f32.mrb[0].mxu0
        %1047 = vmatprep.mubr.bf16.mxu0 0
        %1048 = vmatmul.mubr.bf16.gmra.mrb[0].mxu0 %v793
        %v1049 = vpop.f32.mrb[0].mxu0
        %v1050 = vadd.f32 0.0, %v1049
        %v1051 = vpop.f32.mrb[0].mxu0
        %v1052 = vpop.f32.mrb[0].mxu0
        %v1053 = vadd.f32 0.0, %v1052
        %v1054 = vpop.f32.mrb[0].mxu0
        %1055 = vmatprep.mubr.bf16.mxu0 0
        %1056 = vmatmul.mubr.bf16.gmra.mrb[0].mxu0 %v796
        %v1057 = vpop.f32.mrb[0].mxu0
        %v1058 = vadd.f32 0.0, %v1057
        %v1059 = vpop.f32.mrb[0].mxu0
        %v1060 = vpop.f32.mrb[0].mxu0
        %v1061 = vadd.f32 0.0, %v1060
        %v1062 = vpop.f32.mrb[0].mxu0
        %1063 = vmatprep.mubr.bf16.mxu0 0
        %1064 = vmatmul.mubr.bf16.gmra.mrb[0].mxu0 %v799
        %v1065 = vpop.f32.mrb[0].mxu0
        %v1066 = vadd.f32 0.0, %v1065
        %v1067 = vpop.f32.mrb[0].mxu0
        %v1068 = vpop.f32.mrb[0].mxu0
        %v1069 = vadd.f32 0.0, %v1068
        %v1070 = vpop.f32.mrb[0].mxu0
        %1071 = vmatprep.mubr.bf16.mxu0 0
        %1072 = vmatmul.mubr.bf16.gmra.mrb[0].mxu0 %v802
        %v1073 = vpop.f32.mrb[0].mxu0
        %v1074 = vadd.f32 0.0, %v1073
        %v1075 = vpop.f32.mrb[0].mxu0
        %v1076 = vpop.f32.mrb[0].mxu0
        %v1077 = vadd.f32 0.0, %v1076
        %v1078 = vpop.f32.mrb[0].mxu0
        %1079 = vmatprep.mubr.bf16.mxu0 0
        %1080 = vmatmul.mubr.bf16.gmra.mrb[0].mxu0 %v805
        %v1081 = vpop.f32.mrb[0].mxu0
        %v1082 = vadd.f32 0.0, %v1081
        %v1083 = vpop.f32.mrb[0].mxu0
        %v1084 = vpop.f32.mrb[0].mxu0
        %v1085 = vadd.f32 0.0, %v1084
        %v1086 = vpop.f32.mrb[0].mxu0
        %1087 = vmatprep.mubr.bf16.mxu0 0
        %1088 = vmatmul.mubr.bf16.gmra.mrb[0].mxu0 %v808
        %v1089 = vpop.f32.mrb[0].mxu0
        %v1090 = vadd.f32 0.0, %v1089
        %v1091 = vpop.f32.mrb[0].mxu0
        %v1092 = vpop.f32.mrb[0].mxu0
        %v1093 = vadd.f32 0.0, %v1092
        %v1094 = vpop.f32.mrb[0].mxu0
        %1095 = vmatprep.mubr.bf16.mxu0 0
        %1096 = vmatmul.mubr.bf16.gmra.mrb[0].mxu0 %v811
        %v1097 = vpop.f32.mrb[0].mxu0
        %v1098 = vadd.f32 0.0, %v1097
        %v1099 = vpop.f32.mrb[0].mxu0
        %v1100 = vpop.f32.mrb[0].mxu0
        %v1101 = vadd.f32 0.0, %v1100
        %v1102 = vpop.f32.mrb[0].mxu0
        %1103 = vmatprep.mubr.bf16.mxu0 0
        %1104 = vmatmul.mubr.bf16.gmra.mrb[0].mxu0 %v814
        %v1105 = vpop.f32.mrb[0].mxu0
        %v1106 = vadd.f32 0.0, %v1105
        %v1107 = vpop.f32.mrb[0].mxu0
        %v1108 = vpop.f32.mrb[0].mxu0
        %v1109 = vadd.f32 0.0, %v1108
        %v1110 = vpop.f32.mrb[0].mxu0
        %1111 = vdwg.mxu0
        %v1112 = vadd.f32 %v424, %v858
        %v1113 = vadd.f32 %v425, %v861
        %v1114 = vadd.f32 %v426, %v866
        %v1115 = vadd.f32 %v427, %v869
        %v1116 = vadd.f32 %v428, %v874
        %v1117 = vadd.f32 %v429, %v877
        %v1118 = vadd.f32 %v430, %v882
        %v1119 = vadd.f32 %v431, %v885
        %v1120 = vadd.f32 %v432, %v890
        %v1121 = vadd.f32 %v433, %v893
        %v1122 = vadd.f32 %v434, %v898
        %v1123 = vadd.f32 %v435, %v901
        %v1124 = vadd.f32 %v436, %v906
        %v1125 = vadd.f32 %v437, %v909
        %v1126 = vadd.f32 %v438, %v914
        %v1127 = vadd.f32 %v439, %v917
        %v1128 = vadd.f32 %v440, %v922
        %v1129 = vadd.f32 %v441, %v925
        %v1130 = vadd.f32 %v442, %v930
        %v1131 = vadd.f32 %v443, %v933
        %v1132 = vadd.f32 %v444, %v938
        %v1133 = vadd.f32 %v445, %v941
        %v1134 = vadd.f32 %v446, %v946
        %v1135 = vadd.f32 %v447, %v949
        %v1136 = vadd.f32 %v448, %v954
        %v1137 = vadd.f32 %v449, %v957
        %v1138 = vadd.f32 %v450, %v962
        %v1139 = vadd.f32 %v451, %v965
        %v1140 = vadd.f32 %v452, %v970
        %v1141 = vadd.f32 %v453, %v973
        %v1142 = vadd.f32 %v454, %v978
        %v1143 = vadd.f32 %v455, %v981
        %v1144 = vadd.f32 %v456, %v986
        %v1145 = vadd.f32 %v457, %v989
        %v1146 = vadd.f32 %v458, %v994
        %v1147 = vadd.f32 %v459, %v997
        %v1148 = vadd.f32 %v460, %v1002
        %v1149 = vadd.f32 %v461, %v1005
        %v1150 = vadd.f32 %v462, %v1010
        %v1151 = vadd.f32 %v463, %v1013
        %v1152 = vadd.f32 %v464, %v1018
        %v1153 = vadd.f32 %v465, %v1021
        %v1154 = vadd.f32 %v466, %v1026
        %v1155 = vadd.f32 %v467, %v1029
        %v1156 = vadd.f32 %v468, %v1034
        %v1157 = vadd.f32 %v469, %v1037
        %v1158 = vadd.f32 %v470, %v1042
        %v1159 = vadd.f32 %v471, %v1045
        %v1160 = vadd.f32 %v472, %v1050
        %v1161 = vadd.f32 %v473, %v1053
        %v1162 = vadd.f32 %v474, %v1058
        %v1163 = vadd.f32 %v475, %v1061
        %v1164 = vadd.f32 %v476, %v1066
        %v1165 = vadd.f32 %v477, %v1069
        %v1166 = vadd.f32 %v478, %v1074
        %v1167 = vadd.f32 %v479, %v1077
        %v1168 = vadd.f32 %v480, %v1082
        %v1169 = vadd.f32 %v481, %v1085
        %v1170 = vadd.f32 %v482, %v1090
        %v1171 = vadd.f32 %v483, %v1093
        %v1172 = vadd.f32 %v484, %v1098
        %v1173 = vadd.f32 %v485, %v1101
        %v1174 = vadd.f32 %v486, %v1106
        %v1175 = vadd.f32 %v487, %v1109
        %vm1176 = vcmask 523264
        %1177 = vst.msk [vmem:[#allocation2] sm:$0xff] %vm1176, %v1112
        %1178 = vst.msk [vmem:[#allocation2 + $0x8] sm:$0xff] %vm1176, %v1113
        %1179 = vst.msk [vmem:[#allocation2 + $0x10] sm:$0xff] %vm1176, %v1114
        %1180 = vst.msk [vmem:[#allocation2 + $0x18] sm:$0xff] %vm1176, %v1115
        %1181 = vst.msk [vmem:[#allocation2 + $0x20] sm:$0xff] %vm1176, %v1116
        %1182 = vst.msk [vmem:[#allocation2 + $0x28] sm:$0xff] %vm1176, %v1117
        %1183 = vst.msk [vmem:[#allocation2 + $0x30] sm:$0xff] %vm1176, %v1118
        %1184 = vst.msk [vmem:[#allocation2 + $0x38] sm:$0xff] %vm1176, %v1119
        %1185 = vst.msk [vmem:[#allocation2 + $0x40] sm:$0xff] %vm1176, %v1120
        %1186 = vst.msk [vmem:[#allocation2 + $0x48] sm:$0xff] %vm1176, %v1121
        %1187 = vst.msk [vmem:[#allocation2 + $0x50] sm:$0xff] %vm1176, %v1122
        %1188 = vst.msk [vmem:[#allocation2 + $0x58] sm:$0xff] %vm1176, %v1123
        %1189 = vst.msk [vmem:[#allocation2 + $0x60] sm:$0xff] %vm1176, %v1124
        %1190 = vst.msk [vmem:[#allocation2 + $0x68] sm:$0xff] %vm1176, %v1125
        %1191 = vst.msk [vmem:[#allocation2 + $0x70] sm:$0xff] %vm1176, %v1126
        %1192 = vst.msk [vmem:[#allocation2 + $0x78] sm:$0xff] %vm1176, %v1127
        %1193 = vst.msk [vmem:[#allocation2 + $0x80] sm:$0xff] %vm1176, %v1128
        %1194 = vst.msk [vmem:[#allocation2 + $0x88] sm:$0xff] %vm1176, %v1129
        %1195 = vst.msk [vmem:[#allocation2 + $0x90] sm:$0xff] %vm1176, %v1130
        %1196 = vst.msk [vmem:[#allocation2 + $0x98] sm:$0xff] %vm1176, %v1131
        %1197 = vst.msk [vmem:[#allocation2 + $0xa0] sm:$0xff] %vm1176, %v1132
        %1198 = vst.msk [vmem:[#allocation2 + $0xa8] sm:$0xff] %vm1176, %v1133
        %1199 = vst.msk [vmem:[#allocation2 + $0xb0] sm:$0xff] %vm1176, %v1134
        %1200 = vst.msk [vmem:[#allocation2 + $0xb8] sm:$0xff] %vm1176, %v1135
        %1201 = vst.msk [vmem:[#allocation2 + $0xc0] sm:$0xff] %vm1176, %v1136
        %1202 = vst.msk [vmem:[#allocation2 + $0xc8] sm:$0xff] %vm1176, %v1137
        %1203 = vst.msk [vmem:[#allocation2 + $0xd0] sm:$0xff] %vm1176, %v1138
        %1204 = vst.msk [vmem:[#allocation2 + $0xd8] sm:$0xff] %vm1176, %v1139
        %1205 = vst.msk [vmem:[#allocation2 + $0xe0] sm:$0xff] %vm1176, %v1140
        %1206 = vst.msk [vmem:[#allocation2 + $0xe8] sm:$0xff] %vm1176, %v1141
        %1207 = vst.msk [vmem:[#allocation2 + $0xf0] sm:$0xff] %vm1176, %v1142
        %1208 = vst.msk [vmem:[#allocation2 + $0xf8] sm:$0xff] %vm1176, %v1143
        %1209 = vst.msk [vmem:[#allocation2 + $0x100] sm:$0xff] %vm1176, %v1144
        %1210 = vst.msk [vmem:[#allocation2 + $0x108] sm:$0xff] %vm1176, %v1145
        %1211 = vst.msk [vmem:[#allocation2 + $0x110] sm:$0xff] %vm1176, %v1146
        %1212 = vst.msk [vmem:[#allocation2 + $0x118] sm:$0xff] %vm1176, %v1147
        %1213 = vst.msk [vmem:[#allocation2 + $0x120] sm:$0xff] %vm1176, %v1148
        %1214 = vst.msk [vmem:[#allocation2 + $0x128] sm:$0xff] %vm1176, %v1149
        %1215 = vst.msk [vmem:[#allocation2 + $0x130] sm:$0xff] %vm1176, %v1150
        %1216 = vst.msk [vmem:[#allocation2 + $0x138] sm:$0xff] %vm1176, %v1151
        %1217 = vst.msk [vmem:[#allocation2 + $0x140] sm:$0xff] %vm1176, %v1152
        %1218 = vst.msk [vmem:[#allocation2 + $0x148] sm:$0xff] %vm1176, %v1153
        %1219 = vst.msk [vmem:[#allocation2 + $0x150] sm:$0xff] %vm1176, %v1154
        %1220 = vst.msk [vmem:[#allocation2 + $0x158] sm:$0xff] %vm1176, %v1155
        %1221 = vst.msk [vmem:[#allocation2 + $0x160] sm:$0xff] %vm1176, %v1156
        %1222 = vst.msk [vmem:[#allocation2 + $0x168] sm:$0xff] %vm1176, %v1157
        %1223 = vst.msk [vmem:[#allocation2 + $0x170] sm:$0xff] %vm1176, %v1158
        %1224 = vst.msk [vmem:[#allocation2 + $0x178] sm:$0xff] %vm1176, %v1159
        %1225 = vst.msk [vmem:[#allocation2 + $0x180] sm:$0xff] %vm1176, %v1160
        %1226 = vst.msk [vmem:[#allocation2 + $0x188] sm:$0xff] %vm1176, %v1161
        %1227 = vst.msk [vmem:[#allocation2 + $0x190] sm:$0xff] %vm1176, %v1162
        %1228 = vst.msk [vmem:[#allocation2 + $0x198] sm:$0xff] %vm1176, %v1163
        %1229 = vst.msk [vmem:[#allocation2 + $0x1a0] sm:$0xff] %vm1176, %v1164
        %1230 = vst.msk [vmem:[#allocation2 + $0x1a8] sm:$0xff] %vm1176, %v1165
        %1231 = vst.msk [vmem:[#allocation2 + $0x1b0] sm:$0xff] %vm1176, %v1166
        %1232 = vst.msk [vmem:[#allocation2 + $0x1b8] sm:$0xff] %vm1176, %v1167
        %1233 = vst.msk [vmem:[#allocation2 + $0x1c0] sm:$0xff] %vm1176, %v1168
        %1234 = vst.msk [vmem:[#allocation2 + $0x1c8] sm:$0xff] %vm1176, %v1169
        %1235 = vst.msk [vmem:[#allocation2 + $0x1d0] sm:$0xff] %vm1176, %v1170
        %1236 = vst.msk [vmem:[#allocation2 + $0x1d8] sm:$0xff] %vm1176, %v1171
        %1237 = vst.msk [vmem:[#allocation2 + $0x1e0] sm:$0xff] %vm1176, %v1172
        %1238 = vst.msk [vmem:[#allocation2 + $0x1e8] sm:$0xff] %vm1176, %v1173
        %1239 = vst.msk [vmem:[#allocation2 + $0x1f0] sm:$0xff] %vm1176, %v1174
        %1240 = vst.msk [vmem:[#allocation2 + $0x1f8] sm:$0xff] %vm1176, %v1175
        // Predicated region
        $region49: #{tpu_custom_call.1} parent=39 // pred_check
          %p1241 = pneg %p355
        $region50: #{tpu_custom_call.1} parent=39 // pred_check_branch
          %1243 = sbr.rel (%p1241) target = $region52
        $region51: #{tpu_custom_call.1} parent=39 // pred_region
          %v1244 = vld [vmem:[#allocation2] sm:$0xff]
          %v1245 = vld [vmem:[#allocation2 + $0x8] sm:$0xff]
          %v1246 = vld [vmem:[#allocation2 + $0x10] sm:$0xff]
          %v1247 = vld [vmem:[#allocation2 + $0x18] sm:$0xff]
          %v1248 = vld [vmem:[#allocation2 + $0x20] sm:$0xff]
          %v1249 = vld [vmem:[#allocation2 + $0x28] sm:$0xff]
          %v1250 = vld [vmem:[#allocation2 + $0x30] sm:$0xff]
          %v1251 = vld [vmem:[#allocation2 + $0x38] sm:$0xff]
          %v1252 = vld [vmem:[#allocation2 + $0x40] sm:$0xff]
          %v1253 = vld [vmem:[#allocation2 + $0x48] sm:$0xff]
          %v1254 = vld [vmem:[#allocation2 + $0x50] sm:$0xff]
          %v1255 = vld [vmem:[#allocation2 + $0x58] sm:$0xff]
          %v1256 = vld [vmem:[#allocation2 + $0x60] sm:$0xff]
          %v1257 = vld [vmem:[#allocation2 + $0x68] sm:$0xff]
          %v1258 = vld [vmem:[#allocation2 + $0x70] sm:$0xff]
          %v1259 = vld [vmem:[#allocation2 + $0x78] sm:$0xff]
          %v1260 = vld [vmem:[#allocation2 + $0x80] sm:$0xff]
          %v1261 = vld [vmem:[#allocation2 + $0x88] sm:$0xff]
          %v1262 = vld [vmem:[#allocation2 + $0x90] sm:$0xff]
          %v1263 = vld [vmem:[#allocation2 + $0x98] sm:$0xff]
          %v1264 = vld [vmem:[#allocation2 + $0xa0] sm:$0xff]
          %v1265 = vld [vmem:[#allocation2 + $0xa8] sm:$0xff]
          %v1266 = vld [vmem:[#allocation2 + $0xb0] sm:$0xff]
          %v1267 = vld [vmem:[#allocation2 + $0xb8] sm:$0xff]
          %v1268 = vld [vmem:[#allocation2 + $0xc0] sm:$0xff]
          %v1269 = vld [vmem:[#allocation2 + $0xc8] sm:$0xff]
          %v1270 = vld [vmem:[#allocation2 + $0xd0] sm:$0xff]
          %v1271 = vld [vmem:[#allocation2 + $0xd8] sm:$0xff]
          %v1272 = vld [vmem:[#allocation2 + $0xe0] sm:$0xff]
          %v1273 = vld [vmem:[#allocation2 + $0xe8] sm:$0xff]
          %v1274 = vld [vmem:[#allocation2 + $0xf0] sm:$0xff]
          %v1275 = vld [vmem:[#allocation2 + $0xf8] sm:$0xff]
          %v1276 = vld [vmem:[#allocation2 + $0x100] sm:$0xff]
          %v1277 = vld [vmem:[#allocation2 + $0x108] sm:$0xff]
          %v1278 = vld [vmem:[#allocation2 + $0x110] sm:$0xff]
          %v1279 = vld [vmem:[#allocation2 + $0x118] sm:$0xff]
          %v1280 = vld [vmem:[#allocation2 + $0x120] sm:$0xff]
          %v1281 = vld [vmem:[#allocation2 + $0x128] sm:$0xff]
          %v1282 = vld [vmem:[#allocation2 + $0x130] sm:$0xff]
          %v1283 = vld [vmem:[#allocation2 + $0x138] sm:$0xff]
          %v1284 = vld [vmem:[#allocation2 + $0x140] sm:$0xff]
          %v1285 = vld [vmem:[#allocation2 + $0x148] sm:$0xff]
          %v1286 = vld [vmem:[#allocation2 + $0x150] sm:$0xff]
          %v1287 = vld [vmem:[#allocation2 + $0x158] sm:$0xff]
          %v1288 = vld [vmem:[#allocation2 + $0x160] sm:$0xff]
          %v1289 = vld [vmem:[#allocation2 + $0x168] sm:$0xff]
          %v1290 = vld [vmem:[#allocation2 + $0x170] sm:$0xff]
          %v1291 = vld [vmem:[#allocation2 + $0x178] sm:$0xff]
          %v1292 = vld [vmem:[#allocation2 + $0x180] sm:$0xff]
          %v1293 = vld [vmem:[#allocation2 + $0x188] sm:$0xff]
          %v1294 = vld [vmem:[#allocation2 + $0x190] sm:$0xff]
          %v1295 = vld [vmem:[#allocation2 + $0x198] sm:$0xff]
          %v1296 = vld [vmem:[#allocation2 + $0x1a0] sm:$0xff]
          %v1297 = vld [vmem:[#allocation2 + $0x1a8] sm:$0xff]
          %v1298 = vld [vmem:[#allocation2 + $0x1b0] sm:$0xff]
          %v1299 = vld [vmem:[#allocation2 + $0x1b8] sm:$0xff]
          %v1300 = vld [vmem:[#allocation2 + $0x1c0] sm:$0xff]
          %v1301 = vld [vmem:[#allocation2 + $0x1c8] sm:$0xff]
          %v1302 = vld [vmem:[#allocation2 + $0x1d0] sm:$0xff]
          %v1303 = vld [vmem:[#allocation2 + $0x1d8] sm:$0xff]
          %v1304 = vld [vmem:[#allocation2 + $0x1e0] sm:$0xff]
          %v1305 = vld [vmem:[#allocation2 + $0x1e8] sm:$0xff]
          %v1306 = vld [vmem:[#allocation2 + $0x1f0] sm:$0xff]
          %v1307 = vld [vmem:[#allocation2 + $0x1f8] sm:$0xff]
          %v1308 = vld [vmem:[%s342] sm:$0x1]
          %v1310 = vlaneseq
          %v1311 = vshrl.u32 %v1310, 7
          %v1312 = vsub.s32 0, %v1311
          %v1313 = vrot.slane %v1308, %v1312
          %v1315 = vadd.f32 %v1244, %v1313
          %v1316 = vadd.f32 %v1245, %v1313
          %v1317 = vadd.f32 %v1246, %v1313
          %v1318 = vadd.f32 %v1247, %v1313
          %v1319 = vadd.f32 %v1248, %v1313
          %v1320 = vadd.f32 %v1249, %v1313
          %v1321 = vadd.f32 %v1250, %v1313
          %v1322 = vadd.f32 %v1251, %v1313
          %v1323 = vadd.f32 %v1252, %v1313
          %v1324 = vadd.f32 %v1253, %v1313
          %v1325 = vadd.f32 %v1254, %v1313
          %v1326 = vadd.f32 %v1255, %v1313
          %v1327 = vadd.f32 %v1256, %v1313
          %v1328 = vadd.f32 %v1257, %v1313
          %v1329 = vadd.f32 %v1258, %v1313
          %v1330 = vadd.f32 %v1259, %v1313
          %v1331 = vadd.f32 %v1260, %v1313
          %v1332 = vadd.f32 %v1261, %v1313
          %v1333 = vadd.f32 %v1262, %v1313
          %v1334 = vadd.f32 %v1263, %v1313
          %v1335 = vadd.f32 %v1264, %v1313
          %v1336 = vadd.f32 %v1265, %v1313
          %v1337 = vadd.f32 %v1266, %v1313
          %v1338 = vadd.f32 %v1267, %v1313
          %v1339 = vadd.f32 %v1268, %v1313
          %v1340 = vadd.f32 %v1269, %v1313
          %v1341 = vadd.f32 %v1270, %v1313
          %v1342 = vadd.f32 %v1271, %v1313
          %v1343 = vadd.f32 %v1272, %v1313
          %v1344 = vadd.f32 %v1273, %v1313
          %v1345 = vadd.f32 %v1274, %v1313
          %v1346 = vadd.f32 %v1275, %v1313
          %v1347 = vadd.f32 %v1276, %v1313
          %v1348 = vadd.f32 %v1277, %v1313
          %v1349 = vadd.f32 %v1278, %v1313
          %v1350 = vadd.f32 %v1279, %v1313
          %v1351 = vadd.f32 %v1280, %v1313
          %v1352 = vadd.f32 %v1281, %v1313
          %v1353 = vadd.f32 %v1282, %v1313
          %v1354 = vadd.f32 %v1283, %v1313
          %v1355 = vadd.f32 %v1284, %v1313
          %v1356 = vadd.f32 %v1285, %v1313
          %v1357 = vadd.f32 %v1286, %v1313
          %v1358 = vadd.f32 %v1287, %v1313
          %v1359 = vadd.f32 %v1288, %v1313
          %v1360 = vadd.f32 %v1289, %v1313
          %v1361 = vadd.f32 %v1290, %v1313
          %v1362 = vadd.f32 %v1291, %v1313
          %v1363 = vadd.f32 %v1292, %v1313
          %v1364 = vadd.f32 %v1293, %v1313
          %v1365 = vadd.f32 %v1294, %v1313
          %v1366 = vadd.f32 %v1295, %v1313
          %v1367 = vadd.f32 %v1296, %v1313
          %v1368 = vadd.f32 %v1297, %v1313
          %v1369 = vadd.f32 %v1298, %v1313
          %v1370 = vadd.f32 %v1299, %v1313
          %v1371 = vadd.f32 %v1300, %v1313
          %v1372 = vadd.f32 %v1301, %v1313
          %v1373 = vadd.f32 %v1302, %v1313
          %v1374 = vadd.f32 %v1303, %v1313
          %v1375 = vadd.f32 %v1304, %v1313
          %v1376 = vadd.f32 %v1305, %v1313
          %v1377 = vadd.f32 %v1306, %v1313
          %v1378 = vadd.f32 %v1307, %v1313
          %v1379 = vld [vmem:[%s345] sm:$0x1]
          %v1381 = vlaneseq
          %v1382 = vshrl.u32 %v1381, 7
          %v1383 = vsub.s32 0, %v1382
          %v1384 = vrot.slane %v1379, %v1383
          %v1386 = vmul.f32 %v1315, %v1384
          %v1387 = vmul.f32 %v1316, %v1384
          %v1388 = vmul.f32 %v1317, %v1384
          %v1389 = vmul.f32 %v1318, %v1384
          %v1390 = vmul.f32 %v1319, %v1384
          %v1391 = vmul.f32 %v1320, %v1384
          %v1392 = vmul.f32 %v1321, %v1384
          %v1393 = vmul.f32 %v1322, %v1384
          %v1394 = vmul.f32 %v1323, %v1384
          %v1395 = vmul.f32 %v1324, %v1384
          %v1396 = vmul.f32 %v1325, %v1384
          %v1397 = vmul.f32 %v1326, %v1384
          %v1398 = vmul.f32 %v1327, %v1384
          %v1399 = vmul.f32 %v1328, %v1384
          %v1400 = vmul.f32 %v1329, %v1384
          %v1401 = vmul.f32 %v1330, %v1384
          %v1402 = vmul.f32 %v1331, %v1384
          %v1403 = vmul.f32 %v1332, %v1384
          %v1404 = vmul.f32 %v1333, %v1384
          %v1405 = vmul.f32 %v1334, %v1384
          %v1406 = vmul.f32 %v1335, %v1384
          %v1407 = vmul.f32 %v1336, %v1384
          %v1408 = vmul.f32 %v1337, %v1384
          %v1409 = vmul.f32 %v1338, %v1384
          %v1410 = vmul.f32 %v1339, %v1384
          %v1411 = vmul.f32 %v1340, %v1384
          %v1412 = vmul.f32 %v1341, %v1384
          %v1413 = vmul.f32 %v1342, %v1384
          %v1414 = vmul.f32 %v1343, %v1384
          %v1415 = vmul.f32 %v1344, %v1384
          %v1416 = vmul.f32 %v1345, %v1384
          %v1417 = vmul.f32 %v1346, %v1384
          %v1418 = vmul.f32 %v1347, %v1384
          %v1419 = vmul.f32 %v1348, %v1384
          %v1420 = vmul.f32 %v1349, %v1384
          %v1421 = vmul.f32 %v1350, %v1384
          %v1422 = vmul.f32 %v1351, %v1384
          %v1423 = vmul.f32 %v1352, %v1384
          %v1424 = vmul.f32 %v1353, %v1384
          %v1425 = vmul.f32 %v1354, %v1384
          %v1426 = vmul.f32 %v1355, %v1384
          %v1427 = vmul.f32 %v1356, %v1384
          %v1428 = vmul.f32 %v1357, %v1384
          %v1429 = vmul.f32 %v1358, %v1384
          %v1430 = vmul.f32 %v1359, %v1384
          %v1431 = vmul.f32 %v1360, %v1384
          %v1432 = vmul.f32 %v1361, %v1384
          %v1433 = vmul.f32 %v1362, %v1384
          %v1434 = vmul.f32 %v1363, %v1384
          %v1435 = vmul.f32 %v1364, %v1384
          %v1436 = vmul.f32 %v1365, %v1384
          %v1437 = vmul.f32 %v1366, %v1384
          %v1438 = vmul.f32 %v1367, %v1384
          %v1439 = vmul.f32 %v1368, %v1384
          %v1440 = vmul.f32 %v1369, %v1384
          %v1441 = vmul.f32 %v1370, %v1384
          %v1442 = vmul.f32 %v1371, %v1384
          %v1443 = vmul.f32 %v1372, %v1384
          %v1444 = vmul.f32 %v1373, %v1384
          %v1445 = vmul.f32 %v1374, %v1384
          %v1446 = vmul.f32 %v1375, %v1384
          %v1447 = vmul.f32 %v1376, %v1384
          %v1448 = vmul.f32 %v1377, %v1384
          %v1449 = vmul.f32 %v1378, %v1384
          %v1450 = vld [vmem:[%s348] sm:$0x1]
          %v1452 = vlaneseq
          %v1453 = vshrl.u32 %v1452, 7
          %v1454 = vsub.s32 0, %v1453
          %v1455 = vrot.slane %v1450, %v1454
          %v1457 = vadd.f32 %v1386, %v1455
          %v1458 = vadd.f32 %v1387, %v1455
          %v1459 = vadd.f32 %v1388, %v1455
          %v1460 = vadd.f32 %v1389, %v1455
          %v1461 = vadd.f32 %v1390, %v1455
          %v1462 = vadd.f32 %v1391, %v1455
          %v1463 = vadd.f32 %v1392, %v1455
          %v1464 = vadd.f32 %v1393, %v1455
          %v1465 = vadd.f32 %v1394, %v1455
          %v1466 = vadd.f32 %v1395, %v1455
          %v1467 = vadd.f32 %v1396, %v1455
          %v1468 = vadd.f32 %v1397, %v1455
          %v1469 = vadd.f32 %v1398, %v1455
          %v1470 = vadd.f32 %v1399, %v1455
          %v1471 = vadd.f32 %v1400, %v1455
          %v1472 = vadd.f32 %v1401, %v1455
          %v1473 = vadd.f32 %v1402, %v1455
          %v1474 = vadd.f32 %v1403, %v1455
          %v1475 = vadd.f32 %v1404, %v1455
          %v1476 = vadd.f32 %v1405, %v1455
          %v1477 = vadd.f32 %v1406, %v1455
          %v1478 = vadd.f32 %v1407, %v1455
          %v1479 = vadd.f32 %v1408, %v1455
          %v1480 = vadd.f32 %v1409, %v1455
          %v1481 = vadd.f32 %v1410, %v1455
          %v1482 = vadd.f32 %v1411, %v1455
          %v1483 = vadd.f32 %v1412, %v1455
          %v1484 = vadd.f32 %v1413, %v1455
          %v1485 = vadd.f32 %v1414, %v1455
          %v1486 = vadd.f32 %v1415, %v1455
          %v1487 = vadd.f32 %v1416, %v1455
          %v1488 = vadd.f32 %v1417, %v1455
          %v1489 = vadd.f32 %v1418, %v1455
          %v1490 = vadd.f32 %v1419, %v1455
          %v1491 = vadd.f32 %v1420, %v1455
          %v1492 = vadd.f32 %v1421, %v1455
          %v1493 = vadd.f32 %v1422, %v1455
          %v1494 = vadd.f32 %v1423, %v1455
          %v1495 = vadd.f32 %v1424, %v1455
          %v1496 = vadd.f32 %v1425, %v1455
          %v1497 = vadd.f32 %v1426, %v1455
          %v1498 = vadd.f32 %v1427, %v1455
          %v1499 = vadd.f32 %v1428, %v1455
          %v1500 = vadd.f32 %v1429, %v1455
          %v1501 = vadd.f32 %v1430, %v1455
          %v1502 = vadd.f32 %v1431, %v1455
          %v1503 = vadd.f32 %v1432, %v1455
          %v1504 = vadd.f32 %v1433, %v1455
          %v1505 = vadd.f32 %v1434, %v1455
          %v1506 = vadd.f32 %v1435, %v1455
          %v1507 = vadd.f32 %v1436, %v1455
          %v1508 = vadd.f32 %v1437, %v1455
          %v1509 = vadd.f32 %v1438, %v1455
          %v1510 = vadd.f32 %v1439, %v1455
          %v1511 = vadd.f32 %v1440, %v1455
          %v1512 = vadd.f32 %v1441, %v1455
          %v1513 = vadd.f32 %v1442, %v1455
          %v1514 = vadd.f32 %v1443, %v1455
          %v1515 = vadd.f32 %v1444, %v1455
          %v1516 = vadd.f32 %v1445, %v1455
          %v1517 = vadd.f32 %v1446, %v1455
          %v1518 = vadd.f32 %v1447, %v1455
          %v1519 = vadd.f32 %v1448, %v1455
          %v1520 = vadd.f32 %v1449, %v1455
          %v1521 = vmax.f32 %v1457, 0.0
          %v1522 = vmax.f32 %v1458, 0.0
          %v1523 = vmax.f32 %v1459, 0.0
          %v1524 = vmax.f32 %v1460, 0.0
          %v1525 = vmax.f32 %v1461, 0.0
          %v1526 = vmax.f32 %v1462, 0.0
          %v1527 = vmax.f32 %v1463, 0.0
          %v1528 = vmax.f32 %v1464, 0.0
          %v1529 = vmax.f32 %v1465, 0.0
          %v1530 = vmax.f32 %v1466, 0.0
          %v1531 = vmax.f32 %v1467, 0.0
          %v1532 = vmax.f32 %v1468, 0.0
          %v1533 = vmax.f32 %v1469, 0.0
          %v1534 = vmax.f32 %v1470, 0.0
          %v1535 = vmax.f32 %v1471, 0.0
          %v1536 = vmax.f32 %v1472, 0.0
          %v1537 = vmax.f32 %v1473, 0.0
          %v1538 = vmax.f32 %v1474, 0.0
          %v1539 = vmax.f32 %v1475, 0.0
          %v1540 = vmax.f32 %v1476, 0.0
          %v1541 = vmax.f32 %v1477, 0.0
          %v1542 = vmax.f32 %v1478, 0.0
          %v1543 = vmax.f32 %v1479, 0.0
          %v1544 = vmax.f32 %v1480, 0.0
          %v1545 = vmax.f32 %v1481, 0.0
          %v1546 = vmax.f32 %v1482, 0.0
          %v1547 = vmax.f32 %v1483, 0.0
          %v1548 = vmax.f32 %v1484, 0.0
          %v1549 = vmax.f32 %v1485, 0.0
          %v1550 = vmax.f32 %v1486, 0.0
          %v1551 = vmax.f32 %v1487, 0.0
          %v1552 = vmax.f32 %v1488, 0.0
          %v1553 = vmax.f32 %v1489, 0.0
          %v1554 = vmax.f32 %v1490, 0.0
          %v1555 = vmax.f32 %v1491, 0.0
          %v1556 = vmax.f32 %v1492, 0.0
          %v1557 = vmax.f32 %v1493, 0.0
          %v1558 = vmax.f32 %v1494, 0.0
          %v1559 = vmax.f32 %v1495, 0.0
          %v1560 = vmax.f32 %v1496, 0.0
          %v1561 = vmax.f32 %v1497, 0.0
          %v1562 = vmax.f32 %v1498, 0.0
          %v1563 = vmax.f32 %v1499, 0.0
          %v1564 = vmax.f32 %v1500, 0.0
          %v1565 = vmax.f32 %v1501, 0.0
          %v1566 = vmax.f32 %v1502, 0.0
          %v1567 = vmax.f32 %v1503, 0.0
          %v1568 = vmax.f32 %v1504, 0.0
          %v1569 = vmax.f32 %v1505, 0.0
          %v1570 = vmax.f32 %v1506, 0.0
          %v1571 = vmax.f32 %v1507, 0.0
          %v1572 = vmax.f32 %v1508, 0.0
          %v1573 = vmax.f32 %v1509, 0.0
          %v1574 = vmax.f32 %v1510, 0.0
          %v1575 = vmax.f32 %v1511, 0.0
          %v1576 = vmax.f32 %v1512, 0.0
          %v1577 = vmax.f32 %v1513, 0.0
          %v1578 = vmax.f32 %v1514, 0.0
          %v1579 = vmax.f32 %v1515, 0.0
          %v1580 = vmax.f32 %v1516, 0.0
          %v1581 = vmax.f32 %v1517, 0.0
          %v1582 = vmax.f32 %v1518, 0.0
          %v1583 = vmax.f32 %v1519, 0.0
          %v1584 = vmax.f32 %v1520, 0.0
          %v1585 = vpack.c.bf16 %v1522, %v1521
          %v1586 = vpack.c.bf16 %v1524, %v1523
          %v1587 = vpack.c.bf16 %v1526, %v1525
          %v1588 = vpack.c.bf16 %v1528, %v1527
          %v1589 = vpack.c.bf16 %v1530, %v1529
          %v1590 = vpack.c.bf16 %v1532, %v1531
          %v1591 = vpack.c.bf16 %v1534, %v1533
          %v1592 = vpack.c.bf16 %v1536, %v1535
          %v1593 = vpack.c.bf16 %v1538, %v1537
          %v1594 = vpack.c.bf16 %v1540, %v1539
          %v1595 = vpack.c.bf16 %v1542, %v1541
          %v1596 = vpack.c.bf16 %v1544, %v1543
          %v1597 = vpack.c.bf16 %v1546, %v1545
          %v1598 = vpack.c.bf16 %v1548, %v1547
          %v1599 = vpack.c.bf16 %v1550, %v1549
          %v1600 = vpack.c.bf16 %v1552, %v1551
          %v1601 = vpack.c.bf16 %v1554, %v1553
          %v1602 = vpack.c.bf16 %v1556, %v1555
          %v1603 = vpack.c.bf16 %v1558, %v1557
          %v1604 = vpack.c.bf16 %v1560, %v1559
          %v1605 = vpack.c.bf16 %v1562, %v1561
          %v1606 = vpack.c.bf16 %v1564, %v1563
          %v1607 = vpack.c.bf16 %v1566, %v1565
          %v1608 = vpack.c.bf16 %v1568, %v1567
          %v1609 = vpack.c.bf16 %v1570, %v1569
          %v1610 = vpack.c.bf16 %v1572, %v1571
          %v1611 = vpack.c.bf16 %v1574, %v1573
          %v1612 = vpack.c.bf16 %v1576, %v1575
          %v1613 = vpack.c.bf16 %v1578, %v1577
          %v1614 = vpack.c.bf16 %v1580, %v1579
          %v1615 = vpack.c.bf16 %v1582, %v1581
          %v1616 = vpack.c.bf16 %v1584, %v1583
          %v1649 = vunpack.c.l.b16 %v1585
          %v1650 = vunpack.c.h.b16 %v1585
          %v1651 = vunpack.c.l.b16 %v1586
          %v1652 = vunpack.c.h.b16 %v1586
          %v1653 = vunpack.c.l.b16 %v1587
          %v1654 = vunpack.c.h.b16 %v1587
          %v1655 = vunpack.c.l.b16 %v1588
          %v1656 = vunpack.c.h.b16 %v1588
          %v1657 = vunpack.c.l.b16 %v1589
          %v1658 = vunpack.c.h.b16 %v1589
          %v1659 = vunpack.c.l.b16 %v1590
          %v1660 = vunpack.c.h.b16 %v1590
          %v1661 = vunpack.c.l.b16 %v1591
          %v1662 = vunpack.c.h.b16 %v1591
          %v1663 = vunpack.c.l.b16 %v1592
          %v1664 = vunpack.c.h.b16 %v1592
          %v1665 = vunpack.c.l.b16 %v1593
          %v1666 = vunpack.c.h.b16 %v1593
          %v1667 = vunpack.c.l.b16 %v1594
          %v1668 = vunpack.c.h.b16 %v1594
          %v1669 = vunpack.c.l.b16 %v1595
          %v1670 = vunpack.c.h.b16 %v1595
          %v1671 = vunpack.c.l.b16 %v1596
          %v1672 = vunpack.c.h.b16 %v1596
          %v1673 = vunpack.c.l.b16 %v1597
          %v1674 = vunpack.c.h.b16 %v1597
          %v1675 = vunpack.c.l.b16 %v1598
          %v1676 = vunpack.c.h.b16 %v1598
          %v1677 = vunpack.c.l.b16 %v1599
          %v1678 = vunpack.c.h.b16 %v1599
          %v1679 = vunpack.c.l.b16 %v1600
          %v1680 = vunpack.c.h.b16 %v1600
          %v1681 = vunpack.c.l.b16 %v1601
          %v1682 = vunpack.c.h.b16 %v1601
          %v1683 = vunpack.c.l.b16 %v1602
          %v1684 = vunpack.c.h.b16 %v1602
          %v1685 = vunpack.c.l.b16 %v1603
          %v1686 = vunpack.c.h.b16 %v1603
          %v1687 = vunpack.c.l.b16 %v1604
          %v1688 = vunpack.c.h.b16 %v1604
          %v1689 = vunpack.c.l.b16 %v1605
          %v1690 = vunpack.c.h.b16 %v1605
          %v1691 = vunpack.c.l.b16 %v1606
          %v1692 = vunpack.c.h.b16 %v1606
          %v1693 = vunpack.c.l.b16 %v1607
          %v1694 = vunpack.c.h.b16 %v1607
          %v1695 = vunpack.c.l.b16 %v1608
          %v1696 = vunpack.c.h.b16 %v1608
          %v1697 = vunpack.c.l.b16 %v1609
          %v1698 = vunpack.c.h.b16 %v1609
          %v1699 = vunpack.c.l.b16 %v1610
          %v1700 = vunpack.c.h.b16 %v1610
          %v1701 = vunpack.c.l.b16 %v1611
          %v1702 = vunpack.c.h.b16 %v1611
          %v1703 = vunpack.c.l.b16 %v1612
          %v1704 = vunpack.c.h.b16 %v1612
          %v1705 = vunpack.c.l.b16 %v1613
          %v1706 = vunpack.c.h.b16 %v1613
          %v1707 = vunpack.c.l.b16 %v1614
          %v1708 = vunpack.c.h.b16 %v1614
          %v1709 = vunpack.c.l.b16 %v1615
          %v1710 = vunpack.c.h.b16 %v1615
          %v1711 = vunpack.c.l.b16 %v1616
          %v1712 = vunpack.c.h.b16 %v1616
          %v1713 = vpack.c.b16 %v1649, %v1649
          %v1714 = vpack.c.b16 %v1650, %v1650
          %v1715 = vpack.c.b16 %v1651, %v1651
          %v1716 = vpack.c.b16 %v1652, %v1652
          %v1717 = vpack.c.b16 %v1653, %v1653
          %v1718 = vpack.c.b16 %v1654, %v1654
          %v1719 = vpack.c.b16 %v1655, %v1655
          %v1720 = vpack.c.b16 %v1656, %v1656
          %v1721 = vpack.c.b16 %v1657, %v1657
          %v1722 = vpack.c.b16 %v1658, %v1658
          %v1723 = vpack.c.b16 %v1659, %v1659
          %v1724 = vpack.c.b16 %v1660, %v1660
          %v1725 = vpack.c.b16 %v1661, %v1661
          %v1726 = vpack.c.b16 %v1662, %v1662
          %v1727 = vpack.c.b16 %v1663, %v1663
          %v1728 = vpack.c.b16 %v1664, %v1664
          %v1729 = vpack.c.b16 %v1665, %v1665
          %v1730 = vpack.c.b16 %v1666, %v1666
          %v1731 = vpack.c.b16 %v1667, %v1667
          %v1732 = vpack.c.b16 %v1668, %v1668
          %v1733 = vpack.c.b16 %v1669, %v1669
          %v1734 = vpack.c.b16 %v1670, %v1670
          %v1735 = vpack.c.b16 %v1671, %v1671
          %v1736 = vpack.c.b16 %v1672, %v1672
          %v1737 = vpack.c.b16 %v1673, %v1673
          %v1738 = vpack.c.b16 %v1674, %v1674
          %v1739 = vpack.c.b16 %v1675, %v1675
          %v1740 = vpack.c.b16 %v1676, %v1676
          %v1741 = vpack.c.b16 %v1677, %v1677
          %v1742 = vpack.c.b16 %v1678, %v1678
          %v1743 = vpack.c.b16 %v1679, %v1679
          %v1744 = vpack.c.b16 %v1680, %v1680
          %v1745 = vpack.c.b16 %v1681, %v1681
          %v1746 = vpack.c.b16 %v1682, %v1682
          %v1747 = vpack.c.b16 %v1683, %v1683
          %v1748 = vpack.c.b16 %v1684, %v1684
          %v1749 = vpack.c.b16 %v1685, %v1685
          %v1750 = vpack.c.b16 %v1686, %v1686
          %v1751 = vpack.c.b16 %v1687, %v1687
          %v1752 = vpack.c.b16 %v1688, %v1688
          %v1753 = vpack.c.b16 %v1689, %v1689
          %v1754 = vpack.c.b16 %v1690, %v1690
          %v1755 = vpack.c.b16 %v1691, %v1691
          %v1756 = vpack.c.b16 %v1692, %v1692
          %v1757 = vpack.c.b16 %v1693, %v1693
          %v1758 = vpack.c.b16 %v1694, %v1694
          %v1759 = vpack.c.b16 %v1695, %v1695
          %v1760 = vpack.c.b16 %v1696, %v1696
          %v1761 = vpack.c.b16 %v1697, %v1697
          %v1762 = vpack.c.b16 %v1698, %v1698
          %v1763 = vpack.c.b16 %v1699, %v1699
          %v1764 = vpack.c.b16 %v1700, %v1700
          %v1765 = vpack.c.b16 %v1701, %v1701
          %v1766 = vpack.c.b16 %v1702, %v1702
          %v1767 = vpack.c.b16 %v1703, %v1703
          %v1768 = vpack.c.b16 %v1704, %v1704
          %v1769 = vpack.c.b16 %v1705, %v1705
          %v1770 = vpack.c.b16 %v1706, %v1706
          %v1771 = vpack.c.b16 %v1707, %v1707
          %v1772 = vpack.c.b16 %v1708, %v1708
          %v1773 = vpack.c.b16 %v1709, %v1709
          %v1774 = vpack.c.b16 %v1710, %v1710
          %v1775 = vpack.c.b16 %v1711, %v1711
          %v1776 = vpack.c.b16 %v1712, %v1712
          %vm1841 = vcmask 519168
          %1842 = vst.msk [vmem:[%s325] sm:$0xf] %vm1841, %v1713
          %1843 = vst.msk [vmem:[%s325 + $0x4] sm:$0xf] %vm1841, %v1714
          %1844 = vst.msk [vmem:[%s325 + $0x8] sm:$0xf] %vm1841, %v1715
          %1845 = vst.msk [vmem:[%s325 + $0xc] sm:$0xf] %vm1841, %v1716
          %1846 = vst.msk [vmem:[%s325 + $0x10] sm:$0xf] %vm1841, %v1717
          %1847 = vst.msk [vmem:[%s325 + $0x14] sm:$0xf] %vm1841, %v1718
          %1848 = vst.msk [vmem:[%s325 + $0x18] sm:$0xf] %vm1841, %v1719
          %1849 = vst.msk [vmem:[%s325 + $0x1c] sm:$0xf] %vm1841, %v1720
          %1850 = vst.msk [vmem:[%s325 + $0x20] sm:$0xf] %vm1841, %v1721
          %1851 = vst.msk [vmem:[%s325 + $0x24] sm:$0xf] %vm1841, %v1722
          %1852 = vst.msk [vmem:[%s325 + $0x28] sm:$0xf] %vm1841, %v1723
          %1853 = vst.msk [vmem:[%s325 + $0x2c] sm:$0xf] %vm1841, %v1724
          %1854 = vst.msk [vmem:[%s325 + $0x30] sm:$0xf] %vm1841, %v1725
          %1855 = vst.msk [vmem:[%s325 + $0x34] sm:$0xf] %vm1841, %v1726
          %1856 = vst.msk [vmem:[%s325 + $0x38] sm:$0xf] %vm1841, %v1727
          %1857 = vst.msk [vmem:[%s325 + $0x3c] sm:$0xf] %vm1841, %v1728
          %1858 = vst.msk [vmem:[%s325 + $0x40] sm:$0xf] %vm1841, %v1729
          %1859 = vst.msk [vmem:[%s325 + $0x44] sm:$0xf] %vm1841, %v1730
          %1860 = vst.msk [vmem:[%s325 + $0x48] sm:$0xf] %vm1841, %v1731
          %1861 = vst.msk [vmem:[%s325 + $0x4c] sm:$0xf] %vm1841, %v1732
          %1862 = vst.msk [vmem:[%s325 + $0x50] sm:$0xf] %vm1841, %v1733
          %1863 = vst.msk [vmem:[%s325 + $0x54] sm:$0xf] %vm1841, %v1734
          %1864 = vst.msk [vmem:[%s325 + $0x58] sm:$0xf] %vm1841, %v1735
          %1865 = vst.msk [vmem:[%s325 + $0x5c] sm:$0xf] %vm1841, %v1736
          %1866 = vst.msk [vmem:[%s325 + $0x60] sm:$0xf] %vm1841, %v1737
          %1867 = vst.msk [vmem:[%s325 + $0x64] sm:$0xf] %vm1841, %v1738
          %1868 = vst.msk [vmem:[%s325 + $0x68] sm:$0xf] %vm1841, %v1739
          %1869 = vst.msk [vmem:[%s325 + $0x6c] sm:$0xf] %vm1841, %v1740
          %1870 = vst.msk [vmem:[%s325 + $0x70] sm:$0xf] %vm1841, %v1741
          %1871 = vst.msk [vmem:[%s325 + $0x74] sm:$0xf] %vm1841, %v1742
          %1872 = vst.msk [vmem:[%s325 + $0x78] sm:$0xf] %vm1841, %v1743
          %1873 = vst.msk [vmem:[%s325 + $0x7c] sm:$0xf] %vm1841, %v1744
          %1874 = vst.msk [vmem:[%s325 + $0x80] sm:$0xf] %vm1841, %v1745
          %1875 = vst.msk [vmem:[%s325 + $0x84] sm:$0xf] %vm1841, %v1746
          %1876 = vst.msk [vmem:[%s325 + $0x88] sm:$0xf] %vm1841, %v1747
          %1877 = vst.msk [vmem:[%s325 + $0x8c] sm:$0xf] %vm1841, %v1748
          %1878 = vst.msk [vmem:[%s325 + $0x90] sm:$0xf] %vm1841, %v1749
          %1879 = vst.msk [vmem:[%s325 + $0x94] sm:$0xf] %vm1841, %v1750
          %1880 = vst.msk [vmem:[%s325 + $0x98] sm:$0xf] %vm1841, %v1751
          %1881 = vst.msk [vmem:[%s325 + $0x9c] sm:$0xf] %vm1841, %v1752
          %1882 = vst.msk [vmem:[%s325 + $0xa0] sm:$0xf] %vm1841, %v1753
          %1883 = vst.msk [vmem:[%s325 + $0xa4] sm:$0xf] %vm1841, %v1754
          %1884 = vst.msk [vmem:[%s325 + $0xa8] sm:$0xf] %vm1841, %v1755
          %1885 = vst.msk [vmem:[%s325 + $0xac] sm:$0xf] %vm1841, %v1756
          %1886 = vst.msk [vmem:[%s325 + $0xb0] sm:$0xf] %vm1841, %v1757
          %1887 = vst.msk [vmem:[%s325 + $0xb4] sm:$0xf] %vm1841, %v1758
          %1888 = vst.msk [vmem:[%s325 + $0xb8] sm:$0xf] %vm1841, %v1759
          %1889 = vst.msk [vmem:[%s325 + $0xbc] sm:$0xf] %vm1841, %v1760
          %1890 = vst.msk [vmem:[%s325 + $0xc0] sm:$0xf] %vm1841, %v1761
          %1891 = vst.msk [vmem:[%s325 + $0xc4] sm:$0xf] %vm1841, %v1762
          %1892 = vst.msk [vmem:[%s325 + $0xc8] sm:$0xf] %vm1841, %v1763
          %1893 = vst.msk [vmem:[%s325 + $0xcc] sm:$0xf] %vm1841, %v1764
          %1894 = vst.msk [vmem:[%s325 + $0xd0] sm:$0xf] %vm1841, %v1765
          %1895 = vst.msk [vmem:[%s325 + $0xd4] sm:$0xf] %vm1841, %v1766
          %1896 = vst.msk [vmem:[%s325 + $0xd8] sm:$0xf] %vm1841, %v1767
          %1897 = vst.msk [vmem:[%s325 + $0xdc] sm:$0xf] %vm1841, %v1768
          %1898 = vst.msk [vmem:[%s325 + $0xe0] sm:$0xf] %vm1841, %v1769
          %1899 = vst.msk [vmem:[%s325 + $0xe4] sm:$0xf] %vm1841, %v1770
          %1900 = vst.msk [vmem:[%s325 + $0xe8] sm:$0xf] %vm1841, %v1771
          %1901 = vst.msk [vmem:[%s325 + $0xec] sm:$0xf] %vm1841, %v1772
          %1902 = vst.msk [vmem:[%s325 + $0xf0] sm:$0xf] %vm1841, %v1773
          %1903 = vst.msk [vmem:[%s325 + $0xf4] sm:$0xf] %vm1841, %v1774
          %1904 = vst.msk [vmem:[%s325 + $0xf8] sm:$0xf] %vm1841, %v1775
          %1905 = vst.msk [vmem:[%s325 + $0xfc] sm:$0xf] %vm1841, %v1776
        $region52: #{tpu_custom_call.1} parent=39 // pred_fallthru
          _
        %s1906 = sand.u32 %s182, 1
        %s1907 = sand.u32 %s182, 1
        %s1908 = smul.addr %s1907, 256
        %s1909 = scalar_lea.vmem [#allocation5], %s1908
        // Predicated region
        $region53: #{tpu_custom_call.1} parent=39 // pred_check
          %p1910 = pneg %p192
        $region54: #{tpu_custom_call.1} parent=39 // pred_check_branch
          %1912 = sbr.rel (%p1910) target = $region56
        $region55: #{tpu_custom_call.1} parent=39 // pred_region
          %s1913 = smul.u32 64, %s24
          %s1914 = ssub.s32 11449, %s1913
          %p1915 = scmp.lt.s32.totalorder %s1914, 64
          %s1916 = scalar_select %p1915, %s1914, 64
          %s1917 = smul.u32 64, %s1916
          %p1918 = scmp.ne.s32.totalorder 0, %s1917
          %s1919 = sadd.s32 %s25, %s1913
          %s1920 = smul.addr %s1919, 4
          %s1921 = scalar_lea.vmem %s5, %s1920
          // Predicated region
          $region57: #{tpu_custom_call.1} parent=55 // pred_check
            %p1922 = pneg %p1918
          $region58: #{tpu_custom_call.1} parent=55 // pred_check_branch
            %1924 = sbr.rel (%p1922) target = $region60
          $region59: #{tpu_custom_call.1} parent=55 // pred_region
            // Predicated region
            $region61: #{tpu_custom_call.1} parent=59 // pred_check
              _
            $region62: #{tpu_custom_call.1} parent=59 // pred_check_branch
              %1926 = sbr.rel target = $region64
            $region63: #{tpu_custom_call.1} parent=59 // pred_region
              // Predicated region
              $region83: #{tpu_custom_call.1} parent=63 // pred_check
                _
              $region84: #{tpu_custom_call.1} parent=63 // pred_check_branch
                %2101 = sbr.rel (0) target = $region86
              $region85: #{tpu_custom_call.1} parent=63 // pred_region
                %s2103 = sshrl.u32 %s1916, 6
                // While loop
                $region87: #{tpu_custom_call.1} parent=85 // loop_pre_header
                  _
                $region88: #{tpu_custom_call.1} parent=85 // loop_header
                  %s2105 = sphi 0, %s2107
                  %p2106 = scmp.ge.s32.totalorder %s2105, %s2103
                  %s2110 = sphi 0, %s2243
                  %s2111 = sphi %s1909, %s2246
                  %s2112 = sphi %s1921, %s2247
                $region89: #{tpu_custom_call.1} parent=85 // loop_header_branch
                  %2109 = sbr.rel (%p2106) target = $region93
                $region90: #{tpu_custom_call.1} parent=85 // loop_body
                  %v2113 = vld [vmem:[%s2111] sm:$0xf]
                  %2114 = vst [vmem:[%s2112] sm:$0xf] %v2113
                  %v2115 = vld [vmem:[%s2111 + $0x4] sm:$0xf]
                  %2116 = vst [vmem:[%s2112 + $0x4] sm:$0xf] %v2115
                  %v2117 = vld [vmem:[%s2111 + $0x8] sm:$0xf]
                  %2118 = vst [vmem:[%s2112 + $0x8] sm:$0xf] %v2117
                  %v2119 = vld [vmem:[%s2111 + $0xc] sm:$0xf]
                  %2120 = vst [vmem:[%s2112 + $0xc] sm:$0xf] %v2119
                  %v2121 = vld [vmem:[%s2111 + $0x10] sm:$0xf]
                  %2122 = vst [vmem:[%s2112 + $0x10] sm:$0xf] %v2121
                  %v2123 = vld [vmem:[%s2111 + $0x14] sm:$0xf]
                  %2124 = vst [vmem:[%s2112 + $0x14] sm:$0xf] %v2123
                  %v2125 = vld [vmem:[%s2111 + $0x18] sm:$0xf]
                  %2126 = vst [vmem:[%s2112 + $0x18] sm:$0xf] %v2125
                  %v2127 = vld [vmem:[%s2111 + $0x1c] sm:$0xf]
                  %2128 = vst [vmem:[%s2112 + $0x1c] sm:$0xf] %v2127
                  %v2129 = vld [vmem:[%s2111 + $0x20] sm:$0xf]
                  %2130 = vst [vmem:[%s2112 + $0x20] sm:$0xf] %v2129
                  %v2131 = vld [vmem:[%s2111 + $0x24] sm:$0xf]
                  %2132 = vst [vmem:[%s2112 + $0x24] sm:$0xf] %v2131
                  %v2133 = vld [vmem:[%s2111 + $0x28] sm:$0xf]
                  %2134 = vst [vmem:[%s2112 + $0x28] sm:$0xf] %v2133
                  %v2135 = vld [vmem:[%s2111 + $0x2c] sm:$0xf]
                  %2136 = vst [vmem:[%s2112 + $0x2c] sm:$0xf] %v2135
                  %v2137 = vld [vmem:[%s2111 + $0x30] sm:$0xf]
                  %2138 = vst [vmem:[%s2112 + $0x30] sm:$0xf] %v2137
                  %v2139 = vld [vmem:[%s2111 + $0x34] sm:$0xf]
                  %2140 = vst [vmem:[%s2112 + $0x34] sm:$0xf] %v2139
                  %v2141 = vld [vmem:[%s2111 + $0x38] sm:$0xf]
                  %2142 = vst [vmem:[%s2112 + $0x38] sm:$0xf] %v2141
                  %v2143 = vld [vmem:[%s2111 + $0x3c] sm:$0xf]
                  %2144 = vst [vmem:[%s2112 + $0x3c] sm:$0xf] %v2143
                  %v2145 = vld [vmem:[%s2111 + $0x40] sm:$0xf]
                  %2146 = vst [vmem:[%s2112 + $0x40] sm:$0xf] %v2145
                  %v2147 = vld [vmem:[%s2111 + $0x44] sm:$0xf]
                  %2148 = vst [vmem:[%s2112 + $0x44] sm:$0xf] %v2147
                  %v2149 = vld [vmem:[%s2111 + $0x48] sm:$0xf]
                  %2150 = vst [vmem:[%s2112 + $0x48] sm:$0xf] %v2149
                  %v2151 = vld [vmem:[%s2111 + $0x4c] sm:$0xf]
                  %2152 = vst [vmem:[%s2112 + $0x4c] sm:$0xf] %v2151
                  %v2153 = vld [vmem:[%s2111 + $0x50] sm:$0xf]
                  %2154 = vst [vmem:[%s2112 + $0x50] sm:$0xf] %v2153
                  %v2155 = vld [vmem:[%s2111 + $0x54] sm:$0xf]
                  %2156 = vst [vmem:[%s2112 + $0x54] sm:$0xf] %v2155
                  %v2157 = vld [vmem:[%s2111 + $0x58] sm:$0xf]
                  %2158 = vst [vmem:[%s2112 + $0x58] sm:$0xf] %v2157
                  %v2159 = vld [vmem:[%s2111 + $0x5c] sm:$0xf]
                  %2160 = vst [vmem:[%s2112 + $0x5c] sm:$0xf] %v2159
                  %v2161 = vld [vmem:[%s2111 + $0x60] sm:$0xf]
                  %2162 = vst [vmem:[%s2112 + $0x60] sm:$0xf] %v2161
                  %v2163 = vld [vmem:[%s2111 + $0x64] sm:$0xf]
                  %2164 = vst [vmem:[%s2112 + $0x64] sm:$0xf] %v2163
                  %v2165 = vld [vmem:[%s2111 + $0x68] sm:$0xf]
                  %2166 = vst [vmem:[%s2112 + $0x68] sm:$0xf] %v2165
                  %v2167 = vld [vmem:[%s2111 + $0x6c] sm:$0xf]
                  %2168 = vst [vmem:[%s2112 + $0x6c] sm:$0xf] %v2167
                  %v2169 = vld [vmem:[%s2111 + $0x70] sm:$0xf]
                  %2170 = vst [vmem:[%s2112 + $0x70] sm:$0xf] %v2169
                  %v2171 = vld [vmem:[%s2111 + $0x74] sm:$0xf]
                  %2172 = vst [vmem:[%s2112 + $0x74] sm:$0xf] %v2171
                  %v2173 = vld [vmem:[%s2111 + $0x78] sm:$0xf]
                  %2174 = vst [vmem:[%s2112 + $0x78] sm:$0xf] %v2173
                  %v2175 = vld [vmem:[%s2111 + $0x7c] sm:$0xf]
                  %2176 = vst [vmem:[%s2112 + $0x7c] sm:$0xf] %v2175
                  %v2177 = vld [vmem:[%s2111 + $0x80] sm:$0xf]
                  %2178 = vst [vmem:[%s2112 + $0x80] sm:$0xf] %v2177
                  %v2179 = vld [vmem:[%s2111 + $0x84] sm:$0xf]
                  %2180 = vst [vmem:[%s2112 + $0x84] sm:$0xf] %v2179
                  %v2181 = vld [vmem:[%s2111 + $0x88] sm:$0xf]
                  %2182 = vst [vmem:[%s2112 + $0x88] sm:$0xf] %v2181
                  %v2183 = vld [vmem:[%s2111 + $0x8c] sm:$0xf]
                  %2184 = vst [vmem:[%s2112 + $0x8c] sm:$0xf] %v2183
                  %v2185 = vld [vmem:[%s2111 + $0x90] sm:$0xf]
                  %2186 = vst [vmem:[%s2112 + $0x90] sm:$0xf] %v2185
                  %v2187 = vld [vmem:[%s2111 + $0x94] sm:$0xf]
                  %2188 = vst [vmem:[%s2112 + $0x94] sm:$0xf] %v2187
                  %v2189 = vld [vmem:[%s2111 + $0x98] sm:$0xf]
                  %2190 = vst [vmem:[%s2112 + $0x98] sm:$0xf] %v2189
                  %v2191 = vld [vmem:[%s2111 + $0x9c] sm:$0xf]
                  %2192 = vst [vmem:[%s2112 + $0x9c] sm:$0xf] %v2191
                  %v2193 = vld [vmem:[%s2111 + $0xa0] sm:$0xf]
                  %2194 = vst [vmem:[%s2112 + $0xa0] sm:$0xf] %v2193
                  %v2195 = vld [vmem:[%s2111 + $0xa4] sm:$0xf]
                  %2196 = vst [vmem:[%s2112 + $0xa4] sm:$0xf] %v2195
                  %v2197 = vld [vmem:[%s2111 + $0xa8] sm:$0xf]
                  %2198 = vst [vmem:[%s2112 + $0xa8] sm:$0xf] %v2197
                  %v2199 = vld [vmem:[%s2111 + $0xac] sm:$0xf]
                  %2200 = vst [vmem:[%s2112 + $0xac] sm:$0xf] %v2199
                  %v2201 = vld [vmem:[%s2111 + $0xb0] sm:$0xf]
                  %2202 = vst [vmem:[%s2112 + $0xb0] sm:$0xf] %v2201
                  %v2203 = vld [vmem:[%s2111 + $0xb4] sm:$0xf]
                  %2204 = vst [vmem:[%s2112 + $0xb4] sm:$0xf] %v2203
                  %v2205 = vld [vmem:[%s2111 + $0xb8] sm:$0xf]
                  %2206 = vst [vmem:[%s2112 + $0xb8] sm:$0xf] %v2205
                  %v2207 = vld [vmem:[%s2111 + $0xbc] sm:$0xf]
                  %2208 = vst [vmem:[%s2112 + $0xbc] sm:$0xf] %v2207
                  %v2209 = vld [vmem:[%s2111 + $0xc0] sm:$0xf]
                  %2210 = vst [vmem:[%s2112 + $0xc0] sm:$0xf] %v2209
                  %v2211 = vld [vmem:[%s2111 + $0xc4] sm:$0xf]
                  %2212 = vst [vmem:[%s2112 + $0xc4] sm:$0xf] %v2211
                  %v2213 = vld [vmem:[%s2111 + $0xc8] sm:$0xf]
                  %2214 = vst [vmem:[%s2112 + $0xc8] sm:$0xf] %v2213
                  %v2215 = vld [vmem:[%s2111 + $0xcc] sm:$0xf]
                  %2216 = vst [vmem:[%s2112 + $0xcc] sm:$0xf] %v2215
                  %v2217 = vld [vmem:[%s2111 + $0xd0] sm:$0xf]
                  %2218 = vst [vmem:[%s2112 + $0xd0] sm:$0xf] %v2217
                  %v2219 = vld [vmem:[%s2111 + $0xd4] sm:$0xf]
                  %2220 = vst [vmem:[%s2112 + $0xd4] sm:$0xf] %v2219
                  %v2221 = vld [vmem:[%s2111 + $0xd8] sm:$0xf]
                  %2222 = vst [vmem:[%s2112 + $0xd8] sm:$0xf] %v2221
                  %v2223 = vld [vmem:[%s2111 + $0xdc] sm:$0xf]
                  %2224 = vst [vmem:[%s2112 + $0xdc] sm:$0xf] %v2223
                  %v2225 = vld [vmem:[%s2111 + $0xe0] sm:$0xf]
                  %2226 = vst [vmem:[%s2112 + $0xe0] sm:$0xf] %v2225
                  %v2227 = vld [vmem:[%s2111 + $0xe4] sm:$0xf]
                  %2228 = vst [vmem:[%s2112 + $0xe4] sm:$0xf] %v2227
                  %v2229 = vld [vmem:[%s2111 + $0xe8] sm:$0xf]
                  %2230 = vst [vmem:[%s2112 + $0xe8] sm:$0xf] %v2229
                  %v2231 = vld [vmem:[%s2111 + $0xec] sm:$0xf]
                  %2232 = vst [vmem:[%s2112 + $0xec] sm:$0xf] %v2231
                  %v2233 = vld [vmem:[%s2111 + $0xf0] sm:$0xf]
                  %2234 = vst [vmem:[%s2112 + $0xf0] sm:$0xf] %v2233
                  %v2235 = vld [vmem:[%s2111 + $0xf4] sm:$0xf]
                  %2236 = vst [vmem:[%s2112 + $0xf4] sm:$0xf] %v2235
                  %v2237 = vld [vmem:[%s2111 + $0xf8] sm:$0xf]
                  %2238 = vst [vmem:[%s2112 + $0xf8] sm:$0xf] %v2237
                  %v2239 = vld [vmem:[%s2111 + $0xfc] sm:$0xf]
                  %2240 = vst [vmem:[%s2112 + $0xfc] sm:$0xf] %v2239
                  %s2241 = sadd.s32 1, %s2110
                  %p2242 = scmp.ge.s32.totalorder %s2241, %s2103
                  %s2243 = scalar_select %p2242, 0, %s2241
                  %s2244 = smul.u32 %s2243, 256
                  %s2245 = smul.u32 %s2243, 256
                  %s2246 = scalar_lea.vmem %s1909, %s2244 [#allocation5]
                  %s2247 = scalar_lea.vmem %s1921, %s2245
                $region91: #{tpu_custom_call.1} parent=85 // loop_footer
                  %s2107 = sadd.s32 %s2105, 1
                $region92: #{tpu_custom_call.1} parent=85 // loop_footer_branch
                  %2104 = sbr.rel target = $region88
                $region93: #{tpu_custom_call.1} parent=85 // loop_exit
                  _
                %s2248 = sshrl.u32 %s1916, 6
                %s2249 = sand.u32 %s1916, 63
                %s2250 = smul.u32 %s2248, 64
                %s2251 = smul.u32 4, %s2250
                %s2252 = scalar_lea.vmem %s1909, %s2251 [#allocation5]
                %s2253 = smul.u32 4, %s2250
                %s2254 = scalar_lea.vmem %s1921, %s2253
                // While loop
                $region94: #{tpu_custom_call.1} parent=85 // loop_pre_header
                  _
                $region95: #{tpu_custom_call.1} parent=85 // loop_header
                  %s2256 = sphi 0, %s2258
                  %p2257 = scmp.ge.s32.totalorder %s2256, %s2249
                  %s2261 = sphi 0, %s2268
                  %s2262 = sphi %s2252, %s2271
                  %s2263 = sphi %s2254, %s2272
                $region96: #{tpu_custom_call.1} parent=85 // loop_header_branch
                  %2260 = sbr.rel (%p2257) target = $region100
                $region97: #{tpu_custom_call.1} parent=85 // loop_body
                  %v2264 = vld [vmem:[%s2262] sm:$0xf]
                  %2265 = vst [vmem:[%s2263] sm:$0xf] %v2264
                  %s2266 = sadd.s32 1, %s2261
                  %p2267 = scmp.ge.s32.totalorder %s2266, %s2249
                  %s2268 = scalar_select %p2267, 0, %s2266
                  %s2269 = smul.u32 %s2268, 4
                  %s2270 = smul.u32 %s2268, 4
                  %s2271 = scalar_lea.vmem %s2252, %s2269 [#allocation5]
                  %s2272 = scalar_lea.vmem %s2254, %s2270
                $region98: #{tpu_custom_call.1} parent=85 // loop_footer
                  %s2258 = sadd.s32 %s2256, 1
                $region99: #{tpu_custom_call.1} parent=85 // loop_footer_branch
                  %2255 = sbr.rel target = $region95
                $region100: #{tpu_custom_call.1} parent=85 // loop_exit
                  _
              $region86: #{tpu_custom_call.1} parent=63 // pred_fallthru
                _
            $region64: #{tpu_custom_call.1} parent=59 // pred_fallthru
              _
            // Predicated region
            $region65: #{tpu_custom_call.1} parent=59 // pred_check
              _
            $region66: #{tpu_custom_call.1} parent=59 // pred_check_branch
              %1928 = sbr.rel (0) target = $region68
            $region67: #{tpu_custom_call.1} parent=59 // pred_region
              %s1930 = sshrl.u32 %s1916, 6
              // While loop
              $region69: #{tpu_custom_call.1} parent=67 // loop_pre_header
                _
              $region70: #{tpu_custom_call.1} parent=67 // loop_header
                %s1932 = sphi 0, %s1934
                %p1933 = scmp.ge.s32.totalorder %s1932, %s1930
                %s1937 = sphi 0, %s2070
                %s1938 = sphi %s1909, %s2073
                %s1939 = sphi %s1921, %s2074
              $region71: #{tpu_custom_call.1} parent=67 // loop_header_branch
                %1936 = sbr.rel (%p1933) target = $region75
              $region72: #{tpu_custom_call.1} parent=67 // loop_body
                %v1940 = vld [vmem:[%s1938] sm:$0xf]
                %1941 = vst [vmem:[%s1939] sm:$0xf] %v1940
                %v1942 = vld [vmem:[%s1938 + $0x4] sm:$0xf]
                %1943 = vst [vmem:[%s1939 + $0x4] sm:$0xf] %v1942
                %v1944 = vld [vmem:[%s1938 + $0x8] sm:$0xf]
                %1945 = vst [vmem:[%s1939 + $0x8] sm:$0xf] %v1944
                %v1946 = vld [vmem:[%s1938 + $0xc] sm:$0xf]
                %1947 = vst [vmem:[%s1939 + $0xc] sm:$0xf] %v1946
                %v1948 = vld [vmem:[%s1938 + $0x10] sm:$0xf]
                %1949 = vst [vmem:[%s1939 + $0x10] sm:$0xf] %v1948
                %v1950 = vld [vmem:[%s1938 + $0x14] sm:$0xf]
                %1951 = vst [vmem:[%s1939 + $0x14] sm:$0xf] %v1950
                %v1952 = vld [vmem:[%s1938 + $0x18] sm:$0xf]
                %1953 = vst [vmem:[%s1939 + $0x18] sm:$0xf] %v1952
                %v1954 = vld [vmem:[%s1938 + $0x1c] sm:$0xf]
                %1955 = vst [vmem:[%s1939 + $0x1c] sm:$0xf] %v1954
                %v1956 = vld [vmem:[%s1938 + $0x20] sm:$0xf]
                %1957 = vst [vmem:[%s1939 + $0x20] sm:$0xf] %v1956
                %v1958 = vld [vmem:[%s1938 + $0x24] sm:$0xf]
                %1959 = vst [vmem:[%s1939 + $0x24] sm:$0xf] %v1958
                %v1960 = vld [vmem:[%s1938 + $0x28] sm:$0xf]
                %1961 = vst [vmem:[%s1939 + $0x28] sm:$0xf] %v1960
                %v1962 = vld [vmem:[%s1938 + $0x2c] sm:$0xf]
                %1963 = vst [vmem:[%s1939 + $0x2c] sm:$0xf] %v1962
                %v1964 = vld [vmem:[%s1938 + $0x30] sm:$0xf]
                %1965 = vst [vmem:[%s1939 + $0x30] sm:$0xf] %v1964
                %v1966 = vld [vmem:[%s1938 + $0x34] sm:$0xf]
                %1967 = vst [vmem:[%s1939 + $0x34] sm:$0xf] %v1966
                %v1968 = vld [vmem:[%s1938 + $0x38] sm:$0xf]
                %1969 = vst [vmem:[%s1939 + $0x38] sm:$0xf] %v1968
                %v1970 = vld [vmem:[%s1938 + $0x3c] sm:$0xf]
                %1971 = vst [vmem:[%s1939 + $0x3c] sm:$0xf] %v1970
                %v1972 = vld [vmem:[%s1938 + $0x40] sm:$0xf]
                %1973 = vst [vmem:[%s1939 + $0x40] sm:$0xf] %v1972
                %v1974 = vld [vmem:[%s1938 + $0x44] sm:$0xf]
                %1975 = vst [vmem:[%s1939 + $0x44] sm:$0xf] %v1974
                %v1976 = vld [vmem:[%s1938 + $0x48] sm:$0xf]
                %1977 = vst [vmem:[%s1939 + $0x48] sm:$0xf] %v1976
                %v1978 = vld [vmem:[%s1938 + $0x4c] sm:$0xf]
                %1979 = vst [vmem:[%s1939 + $0x4c] sm:$0xf] %v1978
                %v1980 = vld [vmem:[%s1938 + $0x50] sm:$0xf]
                %1981 = vst [vmem:[%s1939 + $0x50] sm:$0xf] %v1980
                %v1982 = vld [vmem:[%s1938 + $0x54] sm:$0xf]
                %1983 = vst [vmem:[%s1939 + $0x54] sm:$0xf] %v1982
                %v1984 = vld [vmem:[%s1938 + $0x58] sm:$0xf]
                %1985 = vst [vmem:[%s1939 + $0x58] sm:$0xf] %v1984
                %v1986 = vld [vmem:[%s1938 + $0x5c] sm:$0xf]
                %1987 = vst [vmem:[%s1939 + $0x5c] sm:$0xf] %v1986
                %v1988 = vld [vmem:[%s1938 + $0x60] sm:$0xf]
                %1989 = vst [vmem:[%s1939 + $0x60] sm:$0xf] %v1988
                %v1990 = vld [vmem:[%s1938 + $0x64] sm:$0xf]
                %1991 = vst [vmem:[%s1939 + $0x64] sm:$0xf] %v1990
                %v1992 = vld [vmem:[%s1938 + $0x68] sm:$0xf]
                %1993 = vst [vmem:[%s1939 + $0x68] sm:$0xf] %v1992
                %v1994 = vld [vmem:[%s1938 + $0x6c] sm:$0xf]
                %1995 = vst [vmem:[%s1939 + $0x6c] sm:$0xf] %v1994
                %v1996 = vld [vmem:[%s1938 + $0x70] sm:$0xf]
                %1997 = vst [vmem:[%s1939 + $0x70] sm:$0xf] %v1996
                %v1998 = vld [vmem:[%s1938 + $0x74] sm:$0xf]
                %1999 = vst [vmem:[%s1939 + $0x74] sm:$0xf] %v1998
                %v2000 = vld [vmem:[%s1938 + $0x78] sm:$0xf]
                %2001 = vst [vmem:[%s1939 + $0x78] sm:$0xf] %v2000
                %v2002 = vld [vmem:[%s1938 + $0x7c] sm:$0xf]
                %2003 = vst [vmem:[%s1939 + $0x7c] sm:$0xf] %v2002
                %v2004 = vld [vmem:[%s1938 + $0x80] sm:$0xf]
                %2005 = vst [vmem:[%s1939 + $0x80] sm:$0xf] %v2004
                %v2006 = vld [vmem:[%s1938 + $0x84] sm:$0xf]
                %2007 = vst [vmem:[%s1939 + $0x84] sm:$0xf] %v2006
                %v2008 = vld [vmem:[%s1938 + $0x88] sm:$0xf]
                %2009 = vst [vmem:[%s1939 + $0x88] sm:$0xf] %v2008
                %v2010 = vld [vmem:[%s1938 + $0x8c] sm:$0xf]
                %2011 = vst [vmem:[%s1939 + $0x8c] sm:$0xf] %v2010
                %v2012 = vld [vmem:[%s1938 + $0x90] sm:$0xf]
                %2013 = vst [vmem:[%s1939 + $0x90] sm:$0xf] %v2012
                %v2014 = vld [vmem:[%s1938 + $0x94] sm:$0xf]
                %2015 = vst [vmem:[%s1939 + $0x94] sm:$0xf] %v2014
                %v2016 = vld [vmem:[%s1938 + $0x98] sm:$0xf]
                %2017 = vst [vmem:[%s1939 + $0x98] sm:$0xf] %v2016
                %v2018 = vld [vmem:[%s1938 + $0x9c] sm:$0xf]
                %2019 = vst [vmem:[%s1939 + $0x9c] sm:$0xf] %v2018
                %v2020 = vld [vmem:[%s1938 + $0xa0] sm:$0xf]
                %2021 = vst [vmem:[%s1939 + $0xa0] sm:$0xf] %v2020
                %v2022 = vld [vmem:[%s1938 + $0xa4] sm:$0xf]
                %2023 = vst [vmem:[%s1939 + $0xa4] sm:$0xf] %v2022
                %v2024 = vld [vmem:[%s1938 + $0xa8] sm:$0xf]
                %2025 = vst [vmem:[%s1939 + $0xa8] sm:$0xf] %v2024
                %v2026 = vld [vmem:[%s1938 + $0xac] sm:$0xf]
                %2027 = vst [vmem:[%s1939 + $0xac] sm:$0xf] %v2026
                %v2028 = vld [vmem:[%s1938 + $0xb0] sm:$0xf]
                %2029 = vst [vmem:[%s1939 + $0xb0] sm:$0xf] %v2028
                %v2030 = vld [vmem:[%s1938 + $0xb4] sm:$0xf]
                %2031 = vst [vmem:[%s1939 + $0xb4] sm:$0xf] %v2030
                %v2032 = vld [vmem:[%s1938 + $0xb8] sm:$0xf]
                %2033 = vst [vmem:[%s1939 + $0xb8] sm:$0xf] %v2032
                %v2034 = vld [vmem:[%s1938 + $0xbc] sm:$0xf]
                %2035 = vst [vmem:[%s1939 + $0xbc] sm:$0xf] %v2034
                %v2036 = vld [vmem:[%s1938 + $0xc0] sm:$0xf]
                %2037 = vst [vmem:[%s1939 + $0xc0] sm:$0xf] %v2036
                %v2038 = vld [vmem:[%s1938 + $0xc4] sm:$0xf]
                %2039 = vst [vmem:[%s1939 + $0xc4] sm:$0xf] %v2038
                %v2040 = vld [vmem:[%s1938 + $0xc8] sm:$0xf]
                %2041 = vst [vmem:[%s1939 + $0xc8] sm:$0xf] %v2040
                %v2042 = vld [vmem:[%s1938 + $0xcc] sm:$0xf]
                %2043 = vst [vmem:[%s1939 + $0xcc] sm:$0xf] %v2042
                %v2044 = vld [vmem:[%s1938 + $0xd0] sm:$0xf]
                %2045 = vst [vmem:[%s1939 + $0xd0] sm:$0xf] %v2044
                %v2046 = vld [vmem:[%s1938 + $0xd4] sm:$0xf]
                %2047 = vst [vmem:[%s1939 + $0xd4] sm:$0xf] %v2046
                %v2048 = vld [vmem:[%s1938 + $0xd8] sm:$0xf]
                %2049 = vst [vmem:[%s1939 + $0xd8] sm:$0xf] %v2048
                %v2050 = vld [vmem:[%s1938 + $0xdc] sm:$0xf]
                %2051 = vst [vmem:[%s1939 + $0xdc] sm:$0xf] %v2050
                %v2052 = vld [vmem:[%s1938 + $0xe0] sm:$0xf]
                %2053 = vst [vmem:[%s1939 + $0xe0] sm:$0xf] %v2052
                %v2054 = vld [vmem:[%s1938 + $0xe4] sm:$0xf]
                %2055 = vst [vmem:[%s1939 + $0xe4] sm:$0xf] %v2054
                %v2056 = vld [vmem:[%s1938 + $0xe8] sm:$0xf]
                %2057 = vst [vmem:[%s1939 + $0xe8] sm:$0xf] %v2056
                %v2058 = vld [vmem:[%s1938 + $0xec] sm:$0xf]
                %2059 = vst [vmem:[%s1939 + $0xec] sm:$0xf] %v2058
                %v2060 = vld [vmem:[%s1938 + $0xf0] sm:$0xf]
                %2061 = vst [vmem:[%s1939 + $0xf0] sm:$0xf] %v2060
                %v2062 = vld [vmem:[%s1938 + $0xf4] sm:$0xf]
                %2063 = vst [vmem:[%s1939 + $0xf4] sm:$0xf] %v2062
                %v2064 = vld [vmem:[%s1938 + $0xf8] sm:$0xf]
                %2065 = vst [vmem:[%s1939 + $0xf8] sm:$0xf] %v2064
                %v2066 = vld [vmem:[%s1938 + $0xfc] sm:$0xf]
                %2067 = vst [vmem:[%s1939 + $0xfc] sm:$0xf] %v2066
                %s2068 = sadd.s32 1, %s1937
                %p2069 = scmp.ge.s32.totalorder %s2068, %s1930
                %s2070 = scalar_select %p2069, 0, %s2068
                %s2071 = smul.u32 %s2070, 256
                %s2072 = smul.u32 %s2070, 256
                %s2073 = scalar_lea.vmem %s1909, %s2071 [#allocation5]
                %s2074 = scalar_lea.vmem %s1921, %s2072
              $region73: #{tpu_custom_call.1} parent=67 // loop_footer
                %s1934 = sadd.s32 %s1932, 1
              $region74: #{tpu_custom_call.1} parent=67 // loop_footer_branch
                %1931 = sbr.rel target = $region70
              $region75: #{tpu_custom_call.1} parent=67 // loop_exit
                _
              %s2075 = sshrl.u32 %s1916, 6
              %s2076 = sand.u32 %s1916, 63
              %s2077 = smul.u32 %s2075, 64
              %s2078 = smul.u32 4, %s2077
              %s2079 = scalar_lea.vmem %s1909, %s2078 [#allocation5]
              %s2080 = smul.u32 4, %s2077
              %s2081 = scalar_lea.vmem %s1921, %s2080
              // While loop
              $region76: #{tpu_custom_call.1} parent=67 // loop_pre_header
                _
              $region77: #{tpu_custom_call.1} parent=67 // loop_header
                %s2083 = sphi 0, %s2085
                %p2084 = scmp.ge.s32.totalorder %s2083, %s2076
                %s2088 = sphi 0, %s2095
                %s2089 = sphi %s2079, %s2098
                %s2090 = sphi %s2081, %s2099
              $region78: #{tpu_custom_call.1} parent=67 // loop_header_branch
                %2087 = sbr.rel (%p2084) target = $region82
              $region79: #{tpu_custom_call.1} parent=67 // loop_body
                %v2091 = vld [vmem:[%s2089] sm:$0xf]
                %2092 = vst [vmem:[%s2090] sm:$0xf] %v2091
                %s2093 = sadd.s32 1, %s2088
                %p2094 = scmp.ge.s32.totalorder %s2093, %s2076
                %s2095 = scalar_select %p2094, 0, %s2093
                %s2096 = smul.u32 %s2095, 4
                %s2097 = smul.u32 %s2095, 4
                %s2098 = scalar_lea.vmem %s2079, %s2096 [#allocation5]
                %s2099 = scalar_lea.vmem %s2081, %s2097
              $region80: #{tpu_custom_call.1} parent=67 // loop_footer
                %s2085 = sadd.s32 %s2083, 1
              $region81: #{tpu_custom_call.1} parent=67 // loop_footer_branch
                %2082 = sbr.rel target = $region77
              $region82: #{tpu_custom_call.1} parent=67 // loop_exit
                _
            $region68: #{tpu_custom_call.1} parent=59 // pred_fallthru
              _
          $region60: #{tpu_custom_call.1} parent=55 // pred_fallthru
            _
          %2273 = vnop
        $region56: #{tpu_custom_call.1} parent=39 // pred_fallthru
          _
      $region40: #{tpu_custom_call.1} parent=5 // pred_fallthru
        _
      %p2274 = scmp.le.s32.totalorder 2, %s14
      // Predicated region
      $region101: #{tpu_custom_call.1} parent=5 // pred_check
        %p2275 = pneg %p2274
      $region102: #{tpu_custom_call.1} parent=5 // pred_check_branch
        %2277 = sbr.rel (%p2275) target = $region104
      $region103: #{tpu_custom_call.1} parent=5 // pred_region
        %s2278 = ssub.s32 %s14, 2
        // Predicated region
        $region105: #{tpu_custom_call.1} parent=103 // pred_check
          %p2279 = pneg %p198
        $region106: #{tpu_custom_call.1} parent=103 // pred_check_branch
          %2281 = sbr.rel (%p2279) target = $region108
        $region107: #{tpu_custom_call.1} parent=103 // pred_region
          %s2282 = sand.u32 %s183, 1
          %s2283 = sand.u32 %s183, 1
          %s2284 = smul.addr %s2283, 256
          %s2285 = scalar_lea.vmem [#allocation5], %s2284
        $region108: #{tpu_custom_call.1} parent=103 // pred_fallthru
          _
      $region104: #{tpu_custom_call.1} parent=5 // pred_fallthru
        _
    $region6: #{tpu_custom_call.1} parent=1 // loop_footer
      %s18 = sadd.s32 1, %s14
    $region7: #{tpu_custom_call.1} parent=1 // loop_footer_branch
      %13 = sbr.rel target = $region3
    $region8: #{tpu_custom_call.1} parent=1 // loop_exit
      _
    %2286 = vsyncpa [#allocation4], 1
    %s2287 = scalar_lea.sflag [#allocation4], 1
    %2288 = vsyncpa %s2287, 1

</llo_original>
